<compile_context>
chip_gen: v5e
topology: v5e:2x2
jax: 0.10.0
libtpu: 0.0.40
codegen_flags: <defaults>
</compile_context>

<pallas_src>
import functools

import jax
import jax.numpy as jnp
import numpy as np
from jax.experimental import pallas as pl
from jax.experimental.pallas import tpu as pltpu

EPS = 1e-5  # nn.BatchNorm2d default


# ---------------------------------------------------------------------------
# Host-side weight / parameter preparation
# ---------------------------------------------------------------------------
def _band_weight(w_hwio, w_in, w_out, stride, dtype=jnp.bfloat16):
    """(3,3,Ci,Co) HWIO conv weight -> (3, w_in*Ci, w_out*Co) banded matrices.

    Row-tap dy of the 3x3 conv becomes a single matmul  out_slab += A_dy @ M[dy]
    where A_dy is the row-shifted, row-padded input slab and M[dy] carries
    W[dy, dx] on the (input column -> output column) band.  Horizontal zero
    padding is folded into the band (out-of-range taps simply have no weight),
    so only two zero rows are ever materialized inside the kernel.
    """
    kh, kw, ci, co = w_hwio.shape
    sel = np.zeros((w_in, w_out, kw), np.float32)
    for wo in range(w_out):
        for dx in range(kw):
            xu = stride * wo + dx - 1          # unpadded input column of this tap
            if 0 <= xu < w_in:
                sel[xu, wo, dx] = 1.0
    m = jnp.einsum('xwd,ydio->yxiwo', jnp.asarray(sel), w_hwio.astype(jnp.float32))
    return m.reshape(kh, w_in * ci, w_out * co).astype(dtype)


def _tile_row(v, reps):
    """Per-channel vector -> (1, reps*C) row matching the slab lane layout."""
    return jnp.tile(v.astype(jnp.float32), reps).reshape(1, -1)


def _bn_scale_bias(tot, count, gamma, beta):
    """Fold batch stats into a single per-channel scale/bias (mul+add form)."""
    mean = tot[0] / count
    var = jnp.maximum(tot[1] / count - mean * mean, 0.0)   # clamp E[x^2]-m^2 >= 0
    scale = gamma.astype(jnp.float32) * jax.lax.rsqrt(var + EPS)
    bias = beta.astype(jnp.float32) - mean * scale
    return scale, bias


# ---------------------------------------------------------------------------
# Kernels
# ---------------------------------------------------------------------------
def _write_row_padded(pad_ref, slab, h, wc):
    """slab -> rows [1, h] of the scratch; zero only the two halo rows."""
    zrow = jnp.zeros((1, wc), jnp.float32)
    pad_ref[0:1, :] = zrow
    pad_ref[h + 1:h + 2, :] = zrow
    pad_ref[1:h + 1, :] = slab


def _conv_rows(pad_ref, m_ref, b_row, ho, stride):
    """Banded 3x3 conv: three (rows, W*Ci) @ (W*Ci, Wo*Co) bf16 MXU matmuls."""
    wc_out = m_ref.shape[-1]
    acc = jnp.zeros((ho, wc_out), jnp.float32)
    for dy in range(3):
        if stride == 1:
            a = pad_ref[dy:dy + ho, :]
        else:
            # TODO(synk): only used for stride>1; swap to a contiguous slice +
            # sublane subsample if this strided gather shows up in profiles.
            a = pad_ref[pl.ds(dy, ho, stride=stride), :]
        acc = acc + jnp.dot(a.astype(jnp.bfloat16), m_ref[dy],
                            preferred_element_type=jnp.float32)
    return acc + b_row


def _conv1_kernel(x_ref, m_ref, b_ref, y_ref, st_ref, pad_ref, *, H, W, Cin):
    wc = W * Cin
    _write_row_padded(pad_ref, x_ref[...], H, wc)
    y = _conv_rows(pad_ref, m_ref, b_ref[...], H, 1)          # (H, W*Cin) f32
    y_ref[...] = y
    # per-tile partial BatchNorm statistics (kept in slab lane layout)
    st_ref[0:1, :] = jnp.sum(y, axis=0, keepdims=True)
    st_ref[1:2, :] = jnp.sum(y * y, axis=0, keepdims=True)


def _conv2_kernel(x_ref, y1_ref, sc_ref, bs_ref, m_ref, b_ref,
                  y_ref, st_ref, pad_ref, *, H, W, Cin, Ho, stride):
    wc = W * Cin
    # bn1 (precomputed scale/bias) + relu + residual: lane-dense f32 VPU ops
    h = jnp.maximum(y1_ref[...] * sc_ref[...] + bs_ref[...], 0.0) + x_ref[...]
    _write_row_padded(pad_ref, h, H, wc)
    y = _conv_rows(pad_ref, m_ref, b_ref[...], Ho, stride)    # (Ho, Wo*Cout) f32
    y_ref[...] = y
    st_ref[0:1, :] = jnp.sum(y, axis=0, keepdims=True)
    st_ref[1:2, :] = jnp.sum(y * y, axis=0, keepdims=True)


def _bn_relu_kernel(y_ref, sc_ref, bs_ref, o_ref):
    o_ref[...] = jnp.maximum(y_ref[...] * sc_ref[...] + bs_ref[...], 0.0)


# ---------------------------------------------------------------------------
# Forward wrapper
# ---------------------------------------------------------------------------
def resblock_forward(x_nchw, params, stride=1):
    """ResBlock forward: (N, Cin, H, W) -> (N, Cout, Ho, Wo). Training-mode BN."""
    w1, b1, g1, bt1, w2, b2, g2, bt2 = params
    N, Cin, H, W = x_nchw.shape
    Cout = w2.shape[-1]
    Ho = (H - 1) // stride + 1
    Wo = (W - 1) // stride + 1
    wc1, wc2 = W * Cin, Wo * Cout

    # TODO(synk): keep the surrounding model NHWC end-to-end to drop this transpose.
    x_slab = jnp.transpose(x_nchw, (0, 2, 3, 1)).astype(jnp.float32).reshape(N, H, wc1)

    m1 = _band_weight(w1, W, W, 1)                 # (3, W*Cin, W*Cin)   bf16
    m2 = _band_weight(w2, W, Wo, stride)           # (3, W*Cin, Wo*Cout) bf16
    b1_t, b2_t = _tile_row(b1, W), _tile_row(b2, Wo)

    cparams = pltpu.CompilerParams(
        dimension_semantics=("parallel",),         # batch axis -> megacore on v7x
        vmem_limit_bytes=32 * 1024 * 1024)         # explicit; per-step blocks tiny

    # ---- pass 1: conv1 + partial BN1 stats -------------------------------
    y1, st1 = pl.pallas_call(
        functools.partial(_conv1_kernel, H=H, W=W, Cin=Cin),
        out_shape=(jax.ShapeDtypeStruct((N, H, wc1), jnp.float32),
                   jax.ShapeDtypeStruct((N, 2, wc1), jnp.float32)),
        grid_spec=pltpu.PrefetchScalarGridSpec(
            num_scalar_prefetch=0,
            grid=(N,),
            in_specs=[
                pl.BlockSpec((None, H, wc1), lambda i: (i, 0, 0)),   # x slab
                pl.BlockSpec((3, wc1, wc1), lambda i: (0, 0, 0)),    # banded W1
                pl.BlockSpec((1, wc1), lambda i: (0, 0)),            # conv1 bias (tiled)
            ],
            out_specs=[
                pl.BlockSpec((None, H, wc1), lambda i: (i, 0, 0)),   # conv1 out
                pl.BlockSpec((None, 2, wc1), lambda i: (i, 0, 0)),   # partial stats
            ],
            scratch_shapes=[pltpu.VMEM((H + 2, wc1), jnp.float32)]),
        compiler_params=cparams,
    )(x_slab, m1, b1_t)

    tot1 = jnp.sum(st1.reshape(N, 2, W, Cin), axis=(0, 2))          # (2, Cin)
    scale1, bias1 = _bn_scale_bias(tot1, float(N * H * W), g1, bt1)
    sc1_t, bs1_t = _tile_row(scale1, W), _tile_row(bias1, W)

    # ---- pass 2: bn1 + relu + residual + conv2 + partial BN2 stats -------
    y2, st2 = pl.pallas_call(
        functools.partial(_conv2_kernel, H=H, W=W, Cin=Cin, Ho=Ho, stride=stride),
        out_shape=(jax.ShapeDtypeStruct((N, Ho, wc2), jnp.float32),
                   jax.ShapeDtypeStruct((N, 2, wc2), jnp.float32)),
        grid_spec=pltpu.PrefetchScalarGridSpec(
            num_scalar_prefetch=0,
            grid=(N,),
            in_specs=[
                pl.BlockSpec((None, H, wc1), lambda i: (i, 0, 0)),   # x (residual)
                pl.BlockSpec((None, H, wc1), lambda i: (i, 0, 0)),   # conv1 out
                pl.BlockSpec((1, wc1), lambda i: (0, 0)),            # bn1 scale (tiled)
                pl.BlockSpec((1, wc1), lambda i: (0, 0)),            # bn1 bias  (tiled)
                pl.BlockSpec((3, wc1, wc2), lambda i: (0, 0, 0)),    # banded W2
                pl.BlockSpec((1, wc2), lambda i: (0, 0)),            # conv2 bias (tiled)
            ],
            out_specs=[
                pl.BlockSpec((None, Ho, wc2), lambda i: (i, 0, 0)),  # conv2 out
                pl.BlockSpec((None, 2, wc2), lambda i: (i, 0, 0)),   # partial stats
            ],
            scratch_shapes=[pltpu.VMEM((H + 2, wc1), jnp.float32)]),
        compiler_params=cparams,
    )(x_slab, y1, sc1_t, bs1_t, m2, b2_t)

    tot2 = jnp.sum(st2.reshape(N, 2, Wo, Cout), axis=(0, 2))        # (2, Cout)
    scale2, bias2 = _bn_scale_bias(tot2, float(N * Ho * Wo), g2, bt2)
    sc2_t, bs2_t = _tile_row(scale2, Wo), _tile_row(bias2, Wo)

    # ---- pass 3: bn2 + relu (lane-dense elementwise) ----------------------
    out_slab = pl.pallas_call(
        _bn_relu_kernel,
        out_shape=jax.ShapeDtypeStruct((N, Ho, wc2), jnp.float32),
        grid_spec=pltpu.PrefetchScalarGridSpec(
            num_scalar_prefetch=0,
            grid=(N,),
            in_specs=[
                pl.BlockSpec((None, Ho, wc2), lambda i: (i, 0, 0)),
                pl.BlockSpec((1, wc2), lambda i: (0, 0)),
                pl.BlockSpec((1, wc2), lambda i: (0, 0)),
            ],
            out_specs=pl.BlockSpec((None, Ho, wc2), lambda i: (i, 0, 0))),
        compiler_params=cparams,
    )(y2, sc2_t, bs2_t)

    out = out_slab.reshape(N, Ho, Wo, Cout)
    return jnp.transpose(out, (0, 3, 1, 2))                          # NCHW


# ---------------------------------------------------------------------------
# Pure-JAX reference (same bf16 MXU-input rounding) and test harness
# ---------------------------------------------------------------------------
def resblock_reference(x_nchw, params, stride=1):
    x = jnp.transpose(x_nchw, (0, 2, 3, 1)).astype(jnp.float32)
    w1, b1, g1, bt1, w2, b2, g2, bt2 = params

    def conv(v, w, b, s):
        y = jax.lax.conv_general_dilated(
            v.astype(jnp.bfloat16), w.astype(jnp.bfloat16), (s, s),
            ((1, 1), (1, 1)), dimension_numbers=('NHWC', 'HWIO', 'NHWC'),
            preferred_element_type=jnp.float32)
        return y + b.astype(jnp.float32)

    def bn_relu(v, g, bt):
        mean = jnp.mean(v, axis=(0, 1, 2), keepdims=True)
        var = jnp.var(v, axis=(0, 1, 2), keepdims=True)
        v = (v - mean) * jax.lax.rsqrt(var + EPS) * g + bt
        return jnp.maximum(v, 0.0)

    h = bn_relu(conv(x, w1, b1, 1), g1, bt1) + x
    o = bn_relu(conv(h, w2, b2, stride), g2, bt2)
    return jnp.transpose(o, (0, 3, 1, 2))


def init_params(key, inplanes, outplanes):
    ks = jax.random.split(key, 8)
    w1 = 0.1 * jax.random.normal(ks[0], (3, 3, inplanes, inplanes), jnp.float32)
    b1 = 0.05 * jax.random.normal(ks[1], (inplanes,), jnp.float32)
    g1 = 1.0 + 0.1 * jax.random.normal(ks[2], (inplanes,), jnp.float32)
    bt1 = 0.1 * jax.random.normal(ks[3], (inplanes,), jnp.float32)
    w2 = 0.1 * jax.random.normal(ks[4], (3, 3, inplanes, outplanes), jnp.float32)
    b2 = 0.05 * jax.random.normal(ks[5], (outplanes,), jnp.float32)
    g2 = 1.0 + 0.1 * jax.random.normal(ks[6], (outplanes,), jnp.float32)
    bt2 = 0.1 * jax.random.normal(ks[7], (outplanes,), jnp.float32)
    return (w1, b1, g1, bt1, w2, b2, g2, bt2)


if __name__ == "__main__":
    key = jax.random.PRNGKey(0)
    kx, kp = jax.random.split(key)

    N, Cin, H, W = 2, 4, 16, 16
    Cout, stride = 8, 1

    x = jax.random.normal(kx, (N, Cin, H, W), jnp.float32)   # NCHW, PyTorch-style
    params = init_params(kp, Cin, Cout)

    fwd = jax.jit(resblock_forward, static_argnames=("stride",))
    out = jax.block_until_ready(fwd(x, params, stride=stride))

    ref = jax.block_until_ready(resblock_reference(x, params, stride=stride))
    assert out.shape == ref.shape, (out.shape, ref.shape)
    # bf16 MXU inputs (f32 accumulation) -> compare at bf16-level tolerance.
    assert jnp.allclose(out, ref, rtol=1e-2, atol=1e-2), float(
        jnp.max(jnp.abs(out - ref)))

    print("KERNEL_OK")
</pallas_src>

<mosaic_0001>
module attributes {stable_mosaic.version = 11 : i64} {
  func.func @_conv1_kernel(%arg0: i32, %arg1: memref<1x16x64xf32, #tpu.memory_space<vmem>>, %arg2: memref<3x64x64xbf16, #tpu.memory_space<vmem>>, %arg3: memref<1x64xf32, #tpu.memory_space<vmem>>, %arg4: memref<1x16x64xf32, #tpu.memory_space<vmem>>, %arg5: memref<1x2x64xf32, #tpu.memory_space<vmem>>, %arg6: memref<18x64xf32, #tpu.memory_space<vmem>>) attributes {dimension_semantics = [#tpu.dimension_semantics<parallel>], iteration_bounds = array<i64: 2>, scalar_prefetch = 0 : i64, scratch_operands = 1 : i64, tpu.core_type = #tpu.core_type<tc>, window_params = [{transform_indices = @transform_0, window_bounds = array<i64: 1, 16, 64>}, {pipeline_mode = #tpu.pipeline_mode<synchronous>, transform_indices = @transform_1, window_bounds = array<i64: 3, 64, 64>}, {pipeline_mode = #tpu.pipeline_mode<synchronous>, transform_indices = @transform_2, window_bounds = array<i64: 1, 64>}, {transform_indices = @transform_3, window_bounds = array<i64: 1, 16, 64>}, {transform_indices = @transform_4, window_bounds = array<i64: 1, 2, 64>}]} {
    %c0 = arith.constant 0 : index
    %c0_0 = arith.constant 0 : index
    %c0_1 = arith.constant 0 : index
    %0 = vector.load %arg1[%c0, %c0_0, %c0_1] : memref<1x16x64xf32, #tpu.memory_space<vmem>>, vector<1x16x64xf32>
    %1 = vector.shape_cast %0 : vector<1x16x64xf32> to vector<16x64xf32>
    %cst = arith.constant 0.000000e+00 : f32
    %2 = vector.broadcast %cst : f32 to vector<1x64xf32>
    %c0_2 = arith.constant 0 : index
    %c0_3 = arith.constant 0 : index
    %3 = vector.load %arg6[%c0_2, %c0_3] : memref<18x64xf32, #tpu.memory_space<vmem>>, vector<1x64xf32>
    tpu.vector_store %arg6[%c0_2, %c0_3], %2 {strides = array<i32>} : memref<18x64xf32, #tpu.memory_space<vmem>>, vector<1x64xf32>,
    %c17 = arith.constant 17 : index
    %c0_4 = arith.constant 0 : index
    %4 = vector.load %arg6[%c17, %c0_4] : memref<18x64xf32, #tpu.memory_space<vmem>>, vector<1x64xf32>
    tpu.vector_store %arg6[%c17, %c0_4], %2 {strides = array<i32>} : memref<18x64xf32, #tpu.memory_space<vmem>>, vector<1x64xf32>,
    %c1 = arith.constant 1 : index
    %c0_5 = arith.constant 0 : index
    %5 = vector.load %arg6[%c1, %c0_5] : memref<18x64xf32, #tpu.memory_space<vmem>>, vector<16x64xf32>
    tpu.vector_store %arg6[%c1, %c0_5], %1 {strides = array<i32>} : memref<18x64xf32, #tpu.memory_space<vmem>>, vector<16x64xf32>,
    %c0_6 = arith.constant 0 : index
    %c0_7 = arith.constant 0 : index
    %6 = vector.load %arg3[%c0_6, %c0_7] : memref<1x64xf32, #tpu.memory_space<vmem>>, vector<1x64xf32>
    %cst_8 = arith.constant 0.000000e+00 : f32
    %7 = vector.broadcast %cst_8 : f32 to vector<16x64xf32>
    %c0_9 = arith.constant 0 : index
    %c0_10 = arith.constant 0 : index
    %8 = vector.load %arg6[%c0_9, %c0_10] : memref<18x64xf32, #tpu.memory_space<vmem>>, vector<16x64xf32>
    %9 = arith.truncf %8 : vector<16x64xf32> to vector<16x64xbf16>
    %c0_11 = arith.constant 0 : index
    %c0_12 = arith.constant 0 : index
    %c0_13 = arith.constant 0 : index
    %10 = vector.load %arg2[%c0_11, %c0_12, %c0_13] : memref<3x64x64xbf16, #tpu.memory_space<vmem>>, vector<1x64x64xbf16>
    %11 = vector.shape_cast %10 : vector<1x64x64xbf16> to vector<64x64xbf16>
    %cst_14 = arith.constant dense<0.000000e+00> : vector<16x64xf32>
    %12 = tpu.matmul %9, %11, %cst_14 {dimension_numbers = #tpu.dot_dimension_numbers<[1], [0], [0], [1], [0, 0, 1, 1], [], []>} : vector<16x64xbf16>, vector<64x64xbf16>, vector<16x64xf32> -> vector<16x64xf32>
    %13 = arith.addf %7, %12 : vector<16x64xf32>
    %c1_15 = arith.constant 1 : index
    %c0_16 = arith.constant 0 : index
    %14 = vector.load %arg6[%c1_15, %c0_16] : memref<18x64xf32, #tpu.memory_space<vmem>>, vector<16x64xf32>
    %15 = arith.truncf %14 : vector<16x64xf32> to vector<16x64xbf16>
    %c1_17 = arith.constant 1 : index
    %c0_18 = arith.constant 0 : index
    %c0_19 = arith.constant 0 : index
    %16 = vector.load %arg2[%c1_17, %c0_18, %c0_19] : memref<3x64x64xbf16, #tpu.memory_space<vmem>>, vector<1x64x64xbf16>
    %17 = vector.shape_cast %16 : vector<1x64x64xbf16> to vector<64x64xbf16>
    %cst_20 = arith.constant dense<0.000000e+00> : vector<16x64xf32>
    %18 = tpu.matmul %15, %17, %cst_20 {dimension_numbers = #tpu.dot_dimension_numbers<[1], [0], [0], [1], [0, 0, 1, 1], [], []>} : vector<16x64xbf16>, vector<64x64xbf16>, vector<16x64xf32> -> vector<16x64xf32>
    %19 = arith.addf %13, %18 : vector<16x64xf32>
    %c2 = arith.constant 2 : index
    %c0_21 = arith.constant 0 : index
    %20 = vector.load %arg6[%c2, %c0_21] : memref<18x64xf32, #tpu.memory_space<vmem>>, vector<16x64xf32>
    %21 = arith.truncf %20 : vector<16x64xf32> to vector<16x64xbf16>
    %c2_22 = arith.constant 2 : index
    %c0_23 = arith.constant 0 : index
    %c0_24 = arith.constant 0 : index
    %22 = vector.load %arg2[%c2_22, %c0_23, %c0_24] : memref<3x64x64xbf16, #tpu.memory_space<vmem>>, vector<1x64x64xbf16>
    %23 = vector.shape_cast %22 : vector<1x64x64xbf16> to vector<64x64xbf16>
    %cst_25 = arith.constant dense<0.000000e+00> : vector<16x64xf32>
    %24 = tpu.matmul %21, %23, %cst_25 {dimension_numbers = #tpu.dot_dimension_numbers<[1], [0], [0], [1], [0, 0, 1, 1], [], []>} : vector<16x64xbf16>, vector<64x64xbf16>, vector<16x64xf32> -> vector<16x64xf32>
    %25 = arith.addf %19, %24 : vector<16x64xf32>
    %26 = vector.broadcast %6 : vector<1x64xf32> to vector<16x64xf32>
    %27 = arith.addf %25, %26 : vector<16x64xf32>
    %c0_26 = arith.constant 0 : index
    %c0_27 = arith.constant 0 : index
    %c0_28 = arith.constant 0 : index
    %28 = vector.load %arg4[%c0_26, %c0_27, %c0_28] : memref<1x16x64xf32, #tpu.memory_space<vmem>>, vector<1x16x64xf32>
    %29 = vector.shape_cast %28 : vector<1x16x64xf32> to vector<16x64xf32>
    %30 = vector.shape_cast %27 : vector<16x64xf32> to vector<1x16x64xf32>
    tpu.vector_store %arg4[%c0_26, %c0_27, %c0_28], %30 {strides = array<i32>} : memref<1x16x64xf32, #tpu.memory_space<vmem>>, vector<1x16x64xf32>,
    %cst_29 = arith.constant dense<0.000000e+00> : vector<64xf32>
    %31 = vector.multi_reduction <add>, %27, %cst_29 [0] : vector<16x64xf32> to vector<64xf32>
    %32 = vector.shape_cast %31 : vector<64xf32> to vector<1x64xf32>
    %c0_30 = arith.constant 0 : index
    %c0_31 = arith.constant 0 : index
    %c0_32 = arith.constant 0 : index
    %33 = vector.load %arg5[%c0_30, %c0_31, %c0_32] : memref<1x2x64xf32, #tpu.memory_space<vmem>>, vector<1x1x64xf32>
    %34 = vector.shape_cast %33 : vector<1x1x64xf32> to vector<1x64xf32>
    %35 = vector.shape_cast %32 : vector<1x64xf32> to vector<1x1x64xf32>
    tpu.vector_store %arg5[%c0_30, %c0_31, %c0_32], %35 {strides = array<i32>} : memref<1x2x64xf32, #tpu.memory_space<vmem>>, vector<1x1x64xf32>,
    %36 = arith.mulf %27, %27 : vector<16x64xf32>
    %cst_33 = arith.constant dense<0.000000e+00> : vector<64xf32>
    %37 = vector.multi_reduction <add>, %36, %cst_33 [0] : vector<16x64xf32> to vector<64xf32>
    %38 = vector.shape_cast %37 : vector<64xf32> to vector<1x64xf32>
    %c0_34 = arith.constant 0 : index
    %c1_35 = arith.constant 1 : index
    %c0_36 = arith.constant 0 : index
    %39 = vector.load %arg5[%c0_34, %c1_35, %c0_36] : memref<1x2x64xf32, #tpu.memory_space<vmem>>, vector<1x1x64xf32>
    %40 = vector.shape_cast %39 : vector<1x1x64xf32> to vector<1x64xf32>
    %41 = vector.shape_cast %38 : vector<1x64xf32> to vector<1x1x64xf32>
    tpu.vector_store %arg5[%c0_34, %c1_35, %c0_36], %41 {strides = array<i32>} : memref<1x2x64xf32, #tpu.memory_space<vmem>>, vector<1x1x64xf32>,
    return
  }
  func.func @transform_0(%arg0: i32) -> (i32, i32, i32) {
    %c0_i32 = arith.constant 0 : i32
    %c0_i32_0 = arith.constant 0 : i32
    %c0_i32_1 = arith.constant 0 : i32
    return %arg0, %c0_i32, %c0_i32_0 : i32, i32, i32
  }
  func.func @transform_1(%arg0: i32) -> (i32, i32, i32) {
    %c0_i32 = arith.constant 0 : i32
    %c0_i32_0 = arith.constant 0 : i32
    %c0_i32_1 = arith.constant 0 : i32
    %c0_i32_2 = arith.constant 0 : i32
    return %c0_i32, %c0_i32_0, %c0_i32_1 : i32, i32, i32
  }
  func.func @transform_2(%arg0: i32) -> (i32, i32) {
    %c0_i32 = arith.constant 0 : i32
    %c0_i32_0 = arith.constant 0 : i32
    %c0_i32_1 = arith.constant 0 : i32
    return %c0_i32, %c0_i32_0 : i32, i32
  }
  func.func @transform_3(%arg0: i32) -> (i32, i32, i32) {
    %c0_i32 = arith.constant 0 : i32
    %c0_i32_0 = arith.constant 0 : i32
    %c0_i32_1 = arith.constant 0 : i32
    return %arg0, %c0_i32, %c0_i32_0 : i32, i32, i32
  }
  func.func @transform_4(%arg0: i32) -> (i32, i32, i32) {
    %c0_i32 = arith.constant 0 : i32
    %c0_i32_0 = arith.constant 0 : i32
    %c0_i32_1 = arith.constant 0 : i32
    return %arg0, %c0_i32, %c0_i32_0 : i32, i32, i32
  }
}

module attributes {stable_mosaic.version = 11 : i64} {
  func.func @_conv2_kernel(%arg0: i32, %arg1: memref<1x16x64xf32, #tpu.memory_space<vmem>>, %arg2: memref<1x16x64xf32, #tpu.memory_space<vmem>>, %arg3: memref<1x64xf32, #tpu.memory_space<vmem>>, %arg4: memref<1x64xf32, #tpu.memory_space<vmem>>, %arg5: memref<3x64x128xbf16, #tpu.memory_space<vmem>>, %arg6: memref<1x128xf32, #tpu.memory_space<vmem>>, %arg7: memref<1x16x128xf32, #tpu.memory_space<vmem>>, %arg8: memref<1x2x128xf32, #tpu.memory_space<vmem>>, %arg9: memref<18x64xf32, #tpu.memory_space<vmem>>) attributes {dimension_semantics = [#tpu.dimension_semantics<parallel>], iteration_bounds = array<i64: 2>, scalar_prefetch = 0 : i64, scratch_operands = 1 : i64, tpu.core_type = #tpu.core_type<tc>, window_params = [{transform_indices = @transform_0, window_bounds = array<i64: 1, 16, 64>}, {transform_indices = @transform_1, window_bounds = array<i64: 1, 16, 64>}, {pipeline_mode = #tpu.pipeline_mode<synchronous>, transform_indices = @transform_2, window_bounds = array<i64: 1, 64>}, {pipeline_mode = #tpu.pipeline_mode<synchronous>, transform_indices = @transform_3, window_bounds = array<i64: 1, 64>}, {pipeline_mode = #tpu.pipeline_mode<synchronous>, transform_indices = @transform_4, window_bounds = array<i64: 3, 64, 128>}, {pipeline_mode = #tpu.pipeline_mode<synchronous>, transform_indices = @transform_5, window_bounds = array<i64: 1, 128>}, {transform_indices = @transform_6, window_bounds = array<i64: 1, 16, 128>}, {transform_indices = @transform_7, window_bounds = array<i64: 1, 2, 128>}]} {
    %c0 = arith.constant 0 : index
    %c0_0 = arith.constant 0 : index
    %c0_1 = arith.constant 0 : index
    %0 = vector.load %arg2[%c0, %c0_0, %c0_1] : memref<1x16x64xf32, #tpu.memory_space<vmem>>, vector<1x16x64xf32>
    %1 = vector.shape_cast %0 : vector<1x16x64xf32> to vector<16x64xf32>
    %c0_2 = arith.constant 0 : index
    %c0_3 = arith.constant 0 : index
    %2 = vector.load %arg3[%c0_2, %c0_3] : memref<1x64xf32, #tpu.memory_space<vmem>>, vector<1x64xf32>
    %3 = vector.broadcast %2 : vector<1x64xf32> to vector<16x64xf32>
    %4 = arith.mulf %1, %3 : vector<16x64xf32>
    %c0_4 = arith.constant 0 : index
    %c0_5 = arith.constant 0 : index
    %5 = vector.load %arg4[%c0_4, %c0_5] : memref<1x64xf32, #tpu.memory_space<vmem>>, vector<1x64xf32>
    %6 = vector.broadcast %5 : vector<1x64xf32> to vector<16x64xf32>
    %7 = arith.addf %4, %6 : vector<16x64xf32>
    %cst = arith.constant 0.000000e+00 : f32
    %8 = vector.broadcast %cst : f32 to vector<16x64xf32>
    %9 = arith.maximumf %7, %8 : vector<16x64xf32>
    %c0_6 = arith.constant 0 : index
    %c0_7 = arith.constant 0 : index
    %c0_8 = arith.constant 0 : index
    %10 = vector.load %arg1[%c0_6, %c0_7, %c0_8] : memref<1x16x64xf32, #tpu.memory_space<vmem>>, vector<1x16x64xf32>
    %11 = vector.shape_cast %10 : vector<1x16x64xf32> to vector<16x64xf32>
    %12 = arith.addf %9, %11 : vector<16x64xf32>
    %cst_9 = arith.constant 0.000000e+00 : f32
    %13 = vector.broadcast %cst_9 : f32 to vector<1x64xf32>
    %c0_10 = arith.constant 0 : index
    %c0_11 = arith.constant 0 : index
    %14 = vector.load %arg9[%c0_10, %c0_11] : memref<18x64xf32, #tpu.memory_space<vmem>>, vector<1x64xf32>
    tpu.vector_store %arg9[%c0_10, %c0_11], %13 {strides = array<i32>} : memref<18x64xf32, #tpu.memory_space<vmem>>, vector<1x64xf32>,
    %c17 = arith.constant 17 : index
    %c0_12 = arith.constant 0 : index
    %15 = vector.load %arg9[%c17, %c0_12] : memref<18x64xf32, #tpu.memory_space<vmem>>, vector<1x64xf32>
    tpu.vector_store %arg9[%c17, %c0_12], %13 {strides = array<i32>} : memref<18x64xf32, #tpu.memory_space<vmem>>, vector<1x64xf32>,
    %c1 = arith.constant 1 : index
    %c0_13 = arith.constant 0 : index
    %16 = vector.load %arg9[%c1, %c0_13] : memref<18x64xf32, #tpu.memory_space<vmem>>, vector<16x64xf32>
    tpu.vector_store %arg9[%c1, %c0_13], %12 {strides = array<i32>} : memref<18x64xf32, #tpu.memory_space<vmem>>, vector<16x64xf32>,
    %c0_14 = arith.constant 0 : index
    %c0_15 = arith.constant 0 : index
    %17 = vector.load %arg6[%c0_14, %c0_15] : memref<1x128xf32, #tpu.memory_space<vmem>>, vector<1x128xf32>
    %cst_16 = arith.constant 0.000000e+00 : f32
    %18 = vector.broadcast %cst_16 : f32 to vector<16x128xf32>
    %c0_17 = arith.constant 0 : index
    %c0_18 = arith.constant 0 : index
    %19 = vector.load %arg9[%c0_17, %c0_18] : memref<18x64xf32, #tpu.memory_space<vmem>>, vector<16x64xf32>
    %20 = arith.truncf %19 : vector<16x64xf32> to vector<16x64xbf16>
    %c0_19 = arith.constant 0 : index
    %c0_20 = arith.constant 0 : index
    %c0_21 = arith.constant 0 : index
    %21 = vector.load %arg5[%c0_19, %c0_20, %c0_21] : memref<3x64x128xbf16, #tpu.memory_space<vmem>>, vector<1x64x128xbf16>
    %22 = vector.shape_cast %21 : vector<1x64x128xbf16> to vector<64x128xbf16>
    %cst_22 = arith.constant dense<0.000000e+00> : vector<16x128xf32>
    %23 = tpu.matmul %20, %22, %cst_22 {dimension_numbers = #tpu.dot_dimension_numbers<[1], [0], [0], [1], [0, 0, 1, 1], [], []>} : vector<16x64xbf16>, vector<64x128xbf16>, vector<16x128xf32> -> vector<16x128xf32>
    %24 = arith.addf %18, %23 : vector<16x128xf32>
    %c1_23 = arith.constant 1 : index
    %c0_24 = arith.constant 0 : index
    %25 = vector.load %arg9[%c1_23, %c0_24] : memref<18x64xf32, #tpu.memory_space<vmem>>, vector<16x64xf32>
    %26 = arith.truncf %25 : vector<16x64xf32> to vector<16x64xbf16>
    %c1_25 = arith.constant 1 : index
    %c0_26 = arith.constant 0 : index
    %c0_27 = arith.constant 0 : index
    %27 = vector.load %arg5[%c1_25, %c0_26, %c0_27] : memref<3x64x128xbf16, #tpu.memory_space<vmem>>, vector<1x64x128xbf16>
    %28 = vector.shape_cast %27 : vector<1x64x128xbf16> to vector<64x128xbf16>
    %cst_28 = arith.constant dense<0.000000e+00> : vector<16x128xf32>
    %29 = tpu.matmul %26, %28, %cst_28 {dimension_numbers = #tpu.dot_dimension_numbers<[1], [0], [0], [1], [0, 0, 1, 1], [], []>} : vector<16x64xbf16>, vector<64x128xbf16>, vector<16x128xf32> -> vector<16x128xf32>
    %30 = arith.addf %24, %29 : vector<16x128xf32>
    %c2 = arith.constant 2 : index
    %c0_29 = arith.constant 0 : index
    %31 = vector.load %arg9[%c2, %c0_29] : memref<18x64xf32, #tpu.memory_space<vmem>>, vector<16x64xf32>
    %32 = arith.truncf %31 : vector<16x64xf32> to vector<16x64xbf16>
    %c2_30 = arith.constant 2 : index
    %c0_31 = arith.constant 0 : index
    %c0_32 = arith.constant 0 : index
    %33 = vector.load %arg5[%c2_30, %c0_31, %c0_32] : memref<3x64x128xbf16, #tpu.memory_space<vmem>>, vector<1x64x128xbf16>
    %34 = vector.shape_cast %33 : vector<1x64x128xbf16> to vector<64x128xbf16>
    %cst_33 = arith.constant dense<0.000000e+00> : vector<16x128xf32>
    %35 = tpu.matmul %32, %34, %cst_33 {dimension_numbers = #tpu.dot_dimension_numbers<[1], [0], [0], [1], [0, 0, 1, 1], [], []>} : vector<16x64xbf16>, vector<64x128xbf16>, vector<16x128xf32> -> vector<16x128xf32>
    %36 = arith.addf %30, %35 : vector<16x128xf32>
    %37 = vector.broadcast %17 : vector<1x128xf32> to vector<16x128xf32>
    %38 = arith.addf %36, %37 : vector<16x128xf32>
    %c0_34 = arith.constant 0 : index
    %c0_35 = arith.constant 0 : index
    %c0_36 = arith.constant 0 : index
    %39 = vector.load %arg7[%c0_34, %c0_35, %c0_36] : memref<1x16x128xf32, #tpu.memory_space<vmem>>, vector<1x16x128xf32>
    %40 = vector.shape_cast %39 : vector<1x16x128xf32> to vector<16x128xf32>
    %41 = vector.shape_cast %38 : vector<16x128xf32> to vector<1x16x128xf32>
    tpu.vector_store %arg7[%c0_34, %c0_35, %c0_36], %41 {strides = array<i32>} : memref<1x16x128xf32, #tpu.memory_space<vmem>>, vector<1x16x128xf32>,
    %cst_37 = arith.constant dense<0.000000e+00> : vector<128xf32>
    %42 = vector.multi_reduction <add>, %38, %cst_37 [0] : vector<16x128xf32> to vector<128xf32>
    %43 = vector.shape_cast %42 : vector<128xf32> to vector<1x128xf32>
    %c0_38 = arith.constant 0 : index
    %c0_39 = arith.constant 0 : index
    %c0_40 = arith.constant 0 : index
    %44 = vector.load %arg8[%c0_38, %c0_39, %c0_40] : memref<1x2x128xf32, #tpu.memory_space<vmem>>, vector<1x1x128xf32>
    %45 = vector.shape_cast %44 : vector<1x1x128xf32> to vector<1x128xf32>
    %46 = vector.shape_cast %43 : vector<1x128xf32> to vector<1x1x128xf32>
    tpu.vector_store %arg8[%c0_38, %c0_39, %c0_40], %46 {strides = array<i32>} : memref<1x2x128xf32, #tpu.memory_space<vmem>>, vector<1x1x128xf32>,
    %47 = arith.mulf %38, %38 : vector<16x128xf32>
    %cst_41 = arith.constant dense<0.000000e+00> : vector<128xf32>
    %48 = vector.multi_reduction <add>, %47, %cst_41 [0] : vector<16x128xf32> to vector<128xf32>
    %49 = vector.shape_cast %48 : vector<128xf32> to vector<1x128xf32>
    %c0_42 = arith.constant 0 : index
    %c1_43 = arith.constant 1 : index
    %c0_44 = arith.constant 0 : index
    %50 = vector.load %arg8[%c0_42, %c1_43, %c0_44] : memref<1x2x128xf32, #tpu.memory_space<vmem>>, vector<1x1x128xf32>
    %51 = vector.shape_cast %50 : vector<1x1x128xf32> to vector<1x128xf32>
    %52 = vector.shape_cast %49 : vector<1x128xf32> to vector<1x1x128xf32>
    tpu.vector_store %arg8[%c0_42, %c1_43, %c0_44], %52 {strides = array<i32>} : memref<1x2x128xf32, #tpu.memory_space<vmem>>, vector<1x1x128xf32>,
    return
  }
  func.func @transform_0(%arg0: i32) -> (i32, i32, i32) {
    %c0_i32 = arith.constant 0 : i32
    %c0_i32_0 = arith.constant 0 : i32
    %c0_i32_1 = arith.constant 0 : i32
    return %arg0, %c0_i32, %c0_i32_0 : i32, i32, i32
  }
  func.func @transform_1(%arg0: i32) -> (i32, i32, i32) {
    %c0_i32 = arith.constant 0 : i32
    %c0_i32_0 = arith.constant 0 : i32
    %c0_i32_1 = arith.constant 0 : i32
    return %arg0, %c0_i32, %c0_i32_0 : i32, i32, i32
  }
  func.func @transform_2(%arg0: i32) -> (i32, i32) {
    %c0_i32 = arith.constant 0 : i32
    %c0_i32_0 = arith.constant 0 : i32
    %c0_i32_1 = arith.constant 0 : i32
    return %c0_i32, %c0_i32_0 : i32, i32
  }
  func.func @transform_3(%arg0: i32) -> (i32, i32) {
    %c0_i32 = arith.constant 0 : i32
    %c0_i32_0 = arith.constant 0 : i32
    %c0_i32_1 = arith.constant 0 : i32
    return %c0_i32, %c0_i32_0 : i32, i32
  }
  func.func @transform_4(%arg0: i32) -> (i32, i32, i32) {
    %c0_i32 = arith.constant 0 : i32
    %c0_i32_0 = arith.constant 0 : i32
    %c0_i32_1 = arith.constant 0 : i32
    %c0_i32_2 = arith.constant 0 : i32
    return %c0_i32, %c0_i32_0, %c0_i32_1 : i32, i32, i32
  }
  func.func @transform_5(%arg0: i32) -> (i32, i32) {
    %c0_i32 = arith.constant 0 : i32
    %c0_i32_0 = arith.constant 0 : i32
    %c0_i32_1 = arith.constant 0 : i32
    return %c0_i32, %c0_i32_0 : i32, i32
  }
  func.func @transform_6(%arg0: i32) -> (i32, i32, i32) {
    %c0_i32 = arith.constant 0 : i32
    %c0_i32_0 = arith.constant 0 : i32
    %c0_i32_1 = arith.constant 0 : i32
    return %arg0, %c0_i32, %c0_i32_0 : i32, i32, i32
  }
  func.func @transform_7(%arg0: i32) -> (i32, i32, i32) {
    %c0_i32 = arith.constant 0 : i32
    %c0_i32_0 = arith.constant 0 : i32
    %c0_i32_1 = arith.constant 0 : i32
    return %arg0, %c0_i32, %c0_i32_0 : i32, i32, i32
  }
}

module attributes {stable_mosaic.version = 11 : i64} {
  func.func @_bn_relu_kernel(%arg0: i32, %arg1: memref<1x16x128xf32, #tpu.memory_space<vmem>>, %arg2: memref<1x128xf32, #tpu.memory_space<vmem>>, %arg3: memref<1x128xf32, #tpu.memory_space<vmem>>, %arg4: memref<1x16x128xf32, #tpu.memory_space<vmem>>) attributes {dimension_semantics = [#tpu.dimension_semantics<parallel>], iteration_bounds = array<i64: 2>, scalar_prefetch = 0 : i64, scratch_operands = 0 : i64, tpu.core_type = #tpu.core_type<tc>, window_params = [{transform_indices = @transform_0, window_bounds = array<i64: 1, 16, 128>}, {pipeline_mode = #tpu.pipeline_mode<synchronous>, transform_indices = @transform_1, window_bounds = array<i64: 1, 128>}, {pipeline_mode = #tpu.pipeline_mode<synchronous>, transform_indices = @transform_2, window_bounds = array<i64: 1, 128>}, {transform_indices = @transform_3, window_bounds = array<i64: 1, 16, 128>}]} {
    %c0 = arith.constant 0 : index
    %c0_0 = arith.constant 0 : index
    %c0_1 = arith.constant 0 : index
    %0 = vector.load %arg1[%c0, %c0_0, %c0_1] : memref<1x16x128xf32, #tpu.memory_space<vmem>>, vector<1x16x128xf32>
    %1 = vector.shape_cast %0 : vector<1x16x128xf32> to vector<16x128xf32>
    %c0_2 = arith.constant 0 : index
    %c0_3 = arith.constant 0 : index
    %2 = vector.load %arg2[%c0_2, %c0_3] : memref<1x128xf32, #tpu.memory_space<vmem>>, vector<1x128xf32>
    %3 = vector.broadcast %2 : vector<1x128xf32> to vector<16x128xf32>
    %4 = arith.mulf %1, %3 : vector<16x128xf32>
    %c0_4 = arith.constant 0 : index
    %c0_5 = arith.constant 0 : index
    %5 = vector.load %arg3[%c0_4, %c0_5] : memref<1x128xf32, #tpu.memory_space<vmem>>, vector<1x128xf32>
    %6 = vector.broadcast %5 : vector<1x128xf32> to vector<16x128xf32>
    %7 = arith.addf %4, %6 : vector<16x128xf32>
    %cst = arith.constant 0.000000e+00 : f32
    %8 = vector.broadcast %cst : f32 to vector<16x128xf32>
    %9 = arith.maximumf %7, %8 : vector<16x128xf32>
    %c0_6 = arith.constant 0 : index
    %c0_7 = arith.constant 0 : index
    %c0_8 = arith.constant 0 : index
    %10 = vector.load %arg4[%c0_6, %c0_7, %c0_8] : memref<1x16x128xf32, #tpu.memory_space<vmem>>, vector<1x16x128xf32>
    %11 = vector.shape_cast %10 : vector<1x16x128xf32> to vector<16x128xf32>
    %12 = vector.shape_cast %9 : vector<16x128xf32> to vector<1x16x128xf32>
    tpu.vector_store %arg4[%c0_6, %c0_7, %c0_8], %12 {strides = array<i32>} : memref<1x16x128xf32, #tpu.memory_space<vmem>>, vector<1x16x128xf32>,
    return
  }
  func.func @transform_0(%arg0: i32) -> (i32, i32, i32) {
    %c0_i32 = arith.constant 0 : i32
    %c0_i32_0 = arith.constant 0 : i32
    %c0_i32_1 = arith.constant 0 : i32
    return %arg0, %c0_i32, %c0_i32_0 : i32, i32, i32
  }
  func.func @transform_1(%arg0: i32) -> (i32, i32) {
    %c0_i32 = arith.constant 0 : i32
    %c0_i32_0 = arith.constant 0 : i32
    %c0_i32_1 = arith.constant 0 : i32
    return %c0_i32, %c0_i32_0 : i32, i32
  }
  func.func @transform_2(%arg0: i32) -> (i32, i32) {
    %c0_i32 = arith.constant 0 : i32
    %c0_i32_0 = arith.constant 0 : i32
    %c0_i32_1 = arith.constant 0 : i32
    return %c0_i32, %c0_i32_0 : i32, i32
  }
  func.func @transform_3(%arg0: i32) -> (i32, i32, i32) {
    %c0_i32 = arith.constant 0 : i32
    %c0_i32_0 = arith.constant 0 : i32
    %c0_i32_1 = arith.constant 0 : i32
    return %arg0, %c0_i32, %c0_i32_0 : i32, i32, i32
  }
}

</mosaic_0001>

<llo_original>
// kernel: tile.33
$region0: #{tile.33}
  #allocation0 [shape = 's32[1]{0}', space=sflag, size = 0x4, scoped, tag = 'scoped memory for tile.33']
  %s0 = inlined_call_operand.vmem [shape: f32[4], index: 0, kind: input, shape index: {}]
  %s1 = inlined_call_operand.vmem [shape: f32[16,4], index: 1, kind: output, shape index: {}]
  // Predicated region
  $region2: #{tile.33} parent=0 // pred_check
    _
  $region3: #{tile.33} parent=0 // pred_check_branch
    %3 = sbr.rel (0) target = $region5
  $region4: #{tile.33} parent=0 // pred_region
    _
  $region5: #{tile.33} parent=0 // pred_fallthru
    _
  %v4 = vld [vmem:[%s0] ss:$0 sm:$0xff]
  %5 = vst [vmem:[%s1] sm:$0xff] %v4
  %s6 = scalar_lea.vmem %s1, 8
  %7 = vst [vmem:[%s6] sm:$0xff] %v4

// kernel: tile.34
$region0: #{tile.34}
  %s0 = inlined_call_operand.vmem [shape: f32[16,4], index: 0, kind: input, shape index: {}]
  %s1 = inlined_call_operand.vmem [shape: f32[1,64], index: 1, kind: output, shape index: {}]
  $region1: #{tile.34} parent=0
    #allocation0 [shape = 'u8[4096]{0}', space=vmem, size = 0x1000, scoped, tag = 'scoped mem for output reshape']
    %v2 = vld [vmem:[%s0] sm:$0x1]
    %vm3 = vcmask 31744
    %4 = vst.msk [vmem:[#allocation0] sm:$0x1] %vm3, %v2
    %s5 = scalar_lea.vmem %s0, 15
    %v6 = vld [vmem:[%s5] sm:$0x1]
    %7 = vrot.lane.b32.xlu0 %v6, 60
    %v8 = vpop.permute.xlu0 %7
    %vm9 = vcmask 523744
    %10 = vst.msk [vmem:[#allocation0] sm:$0x1] %vm9, %v8
    %s11 = scalar_lea.vmem %s0, 14
    %v12 = vld [vmem:[%s11] sm:$0x1]
    %13 = vrot.lane.b32.xlu0 %v12, 56
    %v14 = vpop.permute.xlu0 %13
    %vm15 = vcmask 490944
    %16 = vst.msk [vmem:[#allocation0] sm:$0x1] %vm15, %v14
    %s17 = scalar_lea.vmem %s0, 13
    %v18 = vld [vmem:[%s17] sm:$0x1]
    %19 = vrot.lane.b32.xlu0 %v18, 52
    %v20 = vpop.permute.xlu0 %19
    %vm21 = vcmask 458144
    %22 = vst.msk [vmem:[#allocation0] sm:$0x1] %vm21, %v20
    %s23 = scalar_lea.vmem %s0, 12
    %v24 = vld [vmem:[%s23] sm:$0x1]
    %25 = vrot.lane.b32.xlu0 %v24, 48
    %v26 = vpop.permute.xlu0 %25
    %vm27 = vcmask 425344
    %28 = vst.msk [vmem:[#allocation0] sm:$0x1] %vm27, %v26
    %s29 = scalar_lea.vmem %s0, 11
    %v30 = vld [vmem:[%s29] sm:$0x1]
    %31 = vrot.lane.b32.xlu0 %v30, 44
    %v32 = vpop.permute.xlu0 %31
    %vm33 = vcmask 392544
    %34 = vst.msk [vmem:[#allocation0] sm:$0x1] %vm33, %v32
    %s35 = scalar_lea.vmem %s0, 10
    %v36 = vld [vmem:[%s35] sm:$0x1]
    %37 = vrot.lane.b32.xlu0 %v36, 40
    %v38 = vpop.permute.xlu0 %37
    %vm39 = vcmask 359744
    %40 = vst.msk [vmem:[#allocation0] sm:$0x1] %vm39, %v38
    %s41 = scalar_lea.vmem %s0, 9
    %v42 = vld [vmem:[%s41] sm:$0x1]
    %43 = vrot.lane.b32.xlu0 %v42, 36
    %v44 = vpop.permute.xlu0 %43
    %vm45 = vcmask 326944
    %46 = vst.msk [vmem:[#allocation0] sm:$0x1] %vm45, %v44
    %s47 = scalar_lea.vmem %s0, 8
    %v48 = vld [vmem:[%s47] sm:$0x1]
    %49 = vrot.lane.b32.xlu0 %v48, 32
    %v50 = vpop.permute.xlu0 %49
    %vm51 = vcmask 294144
    %52 = vst.msk [vmem:[#allocation0] sm:$0x1] %vm51, %v50
    %s53 = scalar_lea.vmem %s0, 7
    %v54 = vld [vmem:[%s53] sm:$0x1]
    %55 = vrot.lane.b32.xlu0 %v54, 28
    %v56 = vpop.permute.xlu0 %55
    %vm57 = vcmask 261344
    %58 = vst.msk [vmem:[#allocation0] sm:$0x1] %vm57, %v56
    %s59 = scalar_lea.vmem %s0, 6
    %v60 = vld [vmem:[%s59] sm:$0x1]
    %61 = vrot.lane.b32.xlu0 %v60, 24
    %v62 = vpop.permute.xlu0 %61
    %vm63 = vcmask 228544
    %64 = vst.msk [vmem:[#allocation0] sm:$0x1] %vm63, %v62
    %s65 = scalar_lea.vmem %s0, 5
    %v66 = vld [vmem:[%s65] sm:$0x1]
    %67 = vrot.lane.b32.xlu0 %v66, 20
    %v68 = vpop.permute.xlu0 %67
    %vm69 = vcmask 195744
    %70 = vst.msk [vmem:[#allocation0] sm:$0x1] %vm69, %v68
    %s71 = scalar_lea.vmem %s0, 4
    %v72 = vld [vmem:[%s71] sm:$0x1]
    %73 = vrot.lane.b32.xlu0 %v72, 16
    %v74 = vpop.permute.xlu0 %73
    %vm75 = vcmask 162944
    %76 = vst.msk [vmem:[#allocation0] sm:$0x1] %vm75, %v74
    %s77 = scalar_lea.vmem %s0, 3
    %v78 = vld [vmem:[%s77] sm:$0x1]
    %79 = vrot.lane.b32.xlu0 %v78, 12
    %v80 = vpop.permute.xlu0 %79
    %vm81 = vcmask 130144
    %82 = vst.msk [vmem:[#allocation0] sm:$0x1] %vm81, %v80
    %s83 = scalar_lea.vmem %s0, 2
    %v84 = vld [vmem:[%s83] sm:$0x1]
    %85 = vrot.lane.b32.xlu0 %v84, 8
    %v86 = vpop.permute.xlu0 %85
    %vm87 = vcmask 97344
    %88 = vst.msk [vmem:[#allocation0] sm:$0x1] %vm87, %v86
    %s89 = scalar_lea.vmem %s0, 1
    %v90 = vld [vmem:[%s89] sm:$0x1]
    %91 = vrot.lane.b32.xlu0 %v90, 4
    %v92 = vpop.permute.xlu0 %91
    %vm93 = vcmask 64544
    %94 = vst.msk [vmem:[#allocation0] sm:$0x1] %vm93, %v92
    %s96 = ssub.s32 2, 1
    %v97 = vld [vmem:[#allocation0] sm:%s96]
    %s99 = ssub.s32 2, 1
    %100 = vst [vmem:[%s1] sm:%s99] %v97

// kernel: resblock_forward.3
$region0: #{resblock_forward.3}
  #allocation0 [shape = 'u32[]', space=smem, size = 0x4, offset = 0x4, fixed_abs, tag = 'smem constant byte address 0x4 - core index']
  #allocation1 [shape = 'u32[72,128]{1,0:T(1,128)}', space=vmem, size = 0x9000, scoped, tag = 'internal scratch']
  #allocation2 [shape = 'f32[18,64]{1,0:T(8,128)}', space=vmem, size = 0x3000, scoped, tag = 'scratch operand']
  %s0 = inlined_call_operand.vmem [shape: f32[2,16,64], index: 0, kind: input, shape index: {}]
  %s1 = inlined_call_operand.vmem [shape: bf16[3,64,64], index: 1, kind: input, shape index: {}]
  %s2 = inlined_call_operand.vmem [shape: f32[1,64], index: 2, kind: input, shape index: {}]
  %s3 = inlined_call_operand.vmem [shape: f32[2,16,64], index: 3, kind: output, shape index: {0}]
  %s4 = inlined_call_operand.vmem [shape: f32[2,2,64], index: 4, kind: output, shape index: {1}]
  %5 = xla_tuple %s3, %s4
  %s6 = sld [smem:[#allocation0]]
  $region53: #{resblock_forward.3} parent=0
    _
  %s8 = ssub.s32 1, %s6
  %s9 = scalar_select 0, %s8, %s6
  loop: start=0, step=1, limit=4
  $region2: #{resblock_forward.3} parent=0 // loop_pre_header
    _
  $region3: #{resblock_forward.3} parent=0 // loop_header
    %s11 = sphi 0, %s15
    %p12 = scmp.ge.s32.totalorder %s11, 4
    %s21 = sphi 0, %s23
    %s24 = sphi 0, %s21
    %s25 = sphi 0, %s24
    %s41 = sphi 0, %s25
    %s45 = sphi 0, %s45
    %s47 = sphi 0, %s45
    %s48 = sphi 0, %s47
    %s62 = sphi 0, %s48
    %s66 = sphi 0, %s66
    %s68 = sphi 0, %s66
    %s69 = sphi 0, %s68
    %s83 = sphi 0, %s69
    %s89 = sphi 0, %s91
    %s92 = sphi 0, %s89
    %s93 = sphi 0, %s92
    %s109 = sphi 0, %s93
    %s115 = sphi 0, %s117
    %s118 = sphi 0, %s115
    %s119 = sphi 0, %s118
    %s135 = sphi 0, %s119
  $region4: #{resblock_forward.3} parent=0 // loop_header_branch
    %14 = sbr.rel (%p12) target = $region8
  $region5: #{resblock_forward.3} parent=0 // loop_body
    %s16 = ssub.s32 %s11, 1
    %s17 = ssub.s32 %s11, 2
    %s18 = sadd.s32 %s11, 1
    %s19 = ssub.s32 %s11, %s18
    %p20 = scmp.eq.s32.totalorder %s19, 0
    %s22 = sadd.s32 %s21, 1
    %s23 = scalar_select %p20, %s21, %s22
    %p26 = pneg %p20
    %p27 = scmp.eq.s32.totalorder %s11, 1
    %p28 = por %p26, %p27
    %p29 = scmp.ne.s32.totalorder %s21, %s24
    %p30 = scmp.eq.s32.totalorder %s11, 0
    %p31 = por %p29, %p30
    %p32 = scmp.ne.s32.totalorder %s21, %s24
    %p33 = scmp.eq.s32.totalorder %s16, 1
    %p34 = por %p32, %p33
    %p35 = scmp.ne.s32.totalorder %s24, %s25
    %p36 = scmp.eq.s32.totalorder %s16, 0
    %p37 = por %p35, %p36
    %p38 = scmp.ne.s32.totalorder %s24, %s25
    %p39 = scmp.eq.s32.totalorder %s17, 1
    %p40 = por %p38, %p39
    %p42 = scmp.ne.s32.totalorder %s25, %s41
    %p43 = scmp.eq.s32.totalorder %s17, 0
    %p44 = por %p42, %p43
    %s46 = sadd.s32 %s45, 1
    %p49 = scmp.eq.s32.totalorder %s11, 1
    %p50 = scmp.ne.s32.totalorder %s45, %s47
    %p51 = scmp.eq.s32.totalorder %s11, 0
    %p52 = por %p50, %p51
    %p53 = scmp.ne.s32.totalorder %s45, %s47
    %p54 = scmp.eq.s32.totalorder %s16, 1
    %p55 = por %p53, %p54
    %p56 = scmp.ne.s32.totalorder %s47, %s48
    %p57 = scmp.eq.s32.totalorder %s16, 0
    %p58 = por %p56, %p57
    %p59 = scmp.ne.s32.totalorder %s47, %s48
    %p60 = scmp.eq.s32.totalorder %s17, 1
    %p61 = por %p59, %p60
    %p63 = scmp.ne.s32.totalorder %s48, %s62
    %p64 = scmp.eq.s32.totalorder %s17, 0
    %p65 = por %p63, %p64
    %s67 = sadd.s32 %s66, 1
    %p70 = scmp.eq.s32.totalorder %s11, 1
    %p71 = scmp.ne.s32.totalorder %s66, %s68
    %p72 = scmp.eq.s32.totalorder %s11, 0
    %p73 = por %p71, %p72
    %p74 = scmp.ne.s32.totalorder %s66, %s68
    %p75 = scmp.eq.s32.totalorder %s16, 1
    %p76 = por %p74, %p75
    %p77 = scmp.ne.s32.totalorder %s68, %s69
    %p78 = scmp.eq.s32.totalorder %s16, 0
    %p79 = por %p77, %p78
    %p80 = scmp.ne.s32.totalorder %s68, %s69
    %p81 = scmp.eq.s32.totalorder %s17, 1
    %p82 = por %p80, %p81
    %p84 = scmp.ne.s32.totalorder %s69, %s83
    %p85 = scmp.eq.s32.totalorder %s17, 0
    %p86 = por %p84, %p85
    %s87 = ssub.s32 %s11, %s18
    %p88 = scmp.eq.s32.totalorder %s87, 0
    %s90 = sadd.s32 %s89, 1
    %s91 = scalar_select %p88, %s89, %s90
    %p94 = pneg %p88
    %p95 = scmp.eq.s32.totalorder %s11, 1
    %p96 = por %p94, %p95
    %p97 = scmp.ne.s32.totalorder %s89, %s92
    %p98 = scmp.eq.s32.totalorder %s11, 0
    %p99 = por %p97, %p98
    %p100 = scmp.ne.s32.totalorder %s89, %s92
    %p101 = scmp.eq.s32.totalorder %s16, 1
    %p102 = por %p100, %p101
    %p103 = scmp.ne.s32.totalorder %s92, %s93
    %p104 = scmp.eq.s32.totalorder %s16, 0
    %p105 = por %p103, %p104
    %p106 = scmp.ne.s32.totalorder %s92, %s93
    %p107 = scmp.eq.s32.totalorder %s17, 1
    %p108 = por %p106, %p107
    %p110 = scmp.ne.s32.totalorder %s93, %s109
    %p111 = scmp.eq.s32.totalorder %s17, 0
    %p112 = por %p110, %p111
    %s113 = ssub.s32 %s11, %s18
    %p114 = scmp.eq.s32.totalorder %s113, 0
    %s116 = sadd.s32 %s115, 1
    %s117 = scalar_select %p114, %s115, %s116
    %p120 = pneg %p114
    %p121 = scmp.eq.s32.totalorder %s11, 1
    %p122 = por %p120, %p121
    %p123 = scmp.ne.s32.totalorder %s115, %s118
    %p124 = scmp.eq.s32.totalorder %s11, 0
    %p125 = por %p123, %p124
    %p126 = scmp.ne.s32.totalorder %s115, %s118
    %p127 = scmp.eq.s32.totalorder %s16, 1
    %p128 = por %p126, %p127
    %p129 = scmp.ne.s32.totalorder %s118, %s119
    %p130 = scmp.eq.s32.totalorder %s16, 0
    %p131 = por %p129, %p130
    %p132 = scmp.ne.s32.totalorder %s118, %s119
    %p133 = scmp.eq.s32.totalorder %s17, 1
    %p134 = por %p132, %p133
    %p136 = scmp.ne.s32.totalorder %s119, %s135
    %p137 = scmp.eq.s32.totalorder %s17, 0
    %p138 = por %p136, %p137
    %p139 = scmp.le.s32.totalorder 1, %s11
    %p140 = scmp.lt.s32.totalorder %s11, 3
    %p141 = pnand %p139, %p140
    %p142 = pneg %p141
    // Predicated region
    $region9: #{resblock_forward.3} parent=5 // pred_check
      _
    $region10: #{resblock_forward.3} parent=5 // pred_check_branch
      %144 = sbr.rel (%p141) target = $region12
    $region11: #{resblock_forward.3} parent=5 // pred_region
      %s145 = ssub.s32 %s11, 1
      // Predicated region
      $region13: #{resblock_forward.3} parent=11 // pred_check
        %p146 = pneg %p58
      $region14: #{resblock_forward.3} parent=11 // pred_check_branch
        %148 = sbr.rel (%p146) target = $region16
      $region15: #{resblock_forward.3} parent=11 // pred_region
        _
      $region16: #{resblock_forward.3} parent=11 // pred_fallthru
        _
      // Predicated region
      $region17: #{resblock_forward.3} parent=11 // pred_check
        %p149 = pneg %p79
      $region18: #{resblock_forward.3} parent=11 // pred_check_branch
        %151 = sbr.rel (%p149) target = $region20
      $region19: #{resblock_forward.3} parent=11 // pred_region
        _
      $region20: #{resblock_forward.3} parent=11 // pred_fallthru
        _
    $region12: #{resblock_forward.3} parent=5 // pred_fallthru
      _
    %p152 = scmp.lt.s32.totalorder %s11, 2
    // Predicated region
    $region21: #{resblock_forward.3} parent=5 // pred_check
      %p153 = pneg %p152
    $region22: #{resblock_forward.3} parent=5 // pred_check_branch
      %155 = sbr.rel (%p153) target = $region24
    $region23: #{resblock_forward.3} parent=5 // pred_region
      // Predicated region
      $region25: #{resblock_forward.3} parent=23 // pred_check
        %p156 = pneg %p31
      $region26: #{resblock_forward.3} parent=23 // pred_check_branch
        %158 = sbr.rel (%p156) target = $region28
      $region27: #{resblock_forward.3} parent=23 // pred_region
        %p159 = scmp.lt.s32.totalorder %s11, 1
        %s160 = scalar_select %p159, %s11, 1
        %s161 = smul.addr %s160, 2
        %s162 = smul.addr %s161, 8
        %s163 = scalar_lea.vmem %s0, %s162
      $region28: #{resblock_forward.3} parent=23 // pred_fallthru
        _
    $region24: #{resblock_forward.3} parent=5 // pred_fallthru
      _
    %p164 = scmp.le.s32.totalorder 1, %s11
    %p165 = scmp.lt.s32.totalorder %s11, 3
    %p166 = pnand %p164, %p165
    %p167 = pneg %p166
    // Predicated region
    $region29: #{resblock_forward.3} parent=5 // pred_check
      _
    $region30: #{resblock_forward.3} parent=5 // pred_check_branch
      %169 = sbr.rel (%p166) target = $region32
    $region31: #{resblock_forward.3} parent=5 // pred_region
      %s170 = ssub.s32 %s11, 1
      %p171 = scmp.lt.s32.totalorder %s16, 1
      %s172 = scalar_select %p171, %s16, 1
      %s173 = smul.addr %s172, 2
      %s174 = smul.addr %s173, 8
      %s175 = scalar_lea.vmem %s0, %s174
      %p176 = pneg %p37
      %p177 = pneg %p34
      %p178 = pneg %p58
      %p179 = pneg %p55
      %p180 = pneg %p79
      %p181 = pneg %p76
      %p182 = pneg %p105
      %p183 = pneg %p102
      %p184 = scmp.lt.s32.totalorder %s16, 1
      %s185 = scalar_select %p184, %s16, 1
      %s186 = smul.addr %s185, 2
      %s187 = smul.addr %s186, 8
      %s188 = scalar_lea.vmem %s3, %s187
      %p189 = pneg %p131
      %p190 = pneg %p128
      %p191 = scmp.lt.s32.totalorder %s16, 1
      %s192 = scalar_select %p191, %s16, 1
      %s193 = smul.addr %s192, 2
      %s194 = scalar_lea.vmem %s4, %s193
      %p195 = scmp.lt.s32.totalorder %s16, 1
      %s196 = scalar_select %p195, %s16, 1
      %s197 = smul.addr %s196, 2
      %s198 = smul.addr %s197, 8
      %s199 = scalar_lea.vmem %s0, %s198
      %p200 = scmp.lt.s32.totalorder %s16, 1
      %s201 = scalar_select %p200, %s16, 1
      %s202 = smul.addr %s201, 2
      %s203 = smul.addr %s202, 8
      %s204 = scalar_lea.vmem %s3, %s203
      %p205 = scmp.lt.s32.totalorder %s16, 1
      %s206 = scalar_select %p205, %s16, 1
      %s207 = smul.addr %s206, 2
      %s208 = scalar_lea.vmem %s4, %s207
      %v210 = vld [vmem:[%s199] sm:$0xff]
      %v211 = vld [vmem:[%s199 + $0x8] sm:$0xff]
      %vm212 = vcmask 516096
      %213 = vst.msk [vmem:[#allocation2] sm:$0x1] %vm212, 0.0
      %214 = vst.msk [vmem:[#allocation2 + $0x11] sm:$0x1] %vm212, 0.0
      %vm215 = vcmask 523264
      %216 = vst.msk [vmem:[#allocation2 + $0x1] sm:$0xff] %vm215, %v210
      %217 = vst.msk [vmem:[#allocation2 + $0x9] sm:$0xff] %vm215, %v211
      %v218 = vld [vmem:[%s2] sm:$0x1]
      %v219 = vld [vmem:[#allocation2] sm:$0xff]
      %v220 = vld [vmem:[#allocation2 + $0x8] sm:$0xff]
      %v221 = vpack.c.bf16 %v220, %v219
      %v222 = vld [vmem:[%s1] sm:$0xf]
      %v223 = vld [vmem:[%s1 + $0x4] sm:$0xf]
      %v224 = vld [vmem:[%s1 + $0x8] sm:$0xf]
      %v225 = vld [vmem:[%s1 + $0xc] sm:$0xf]
      %v226 = vld [vmem:[%s1 + $0x10] sm:$0xf]
      %v227 = vld [vmem:[%s1 + $0x14] sm:$0xf]
      %v228 = vld [vmem:[%s1 + $0x18] sm:$0xf]
      %v229 = vld [vmem:[%s1 + $0x1c] sm:$0xf]
      %v230 = vld [vmem:[#allocation2 + $0x1] sm:$0xff]
      %v231 = vld [vmem:[#allocation2 + $0x9] sm:$0xff]
      %v232 = vpack.c.bf16 %v231, %v230
      %s233 = scalar_lea.vmem %s1, 32
      %v234 = vld [vmem:[%s233] sm:$0xf]
      %v235 = vld [vmem:[%s233 + $0x4] sm:$0xf]
      %v236 = vld [vmem:[%s233 + $0x8] sm:$0xf]
      %v237 = vld [vmem:[%s233 + $0xc] sm:$0xf]
      %v238 = vld [vmem:[%s233 + $0x10] sm:$0xf]
      %v239 = vld [vmem:[%s233 + $0x14] sm:$0xf]
      %v240 = vld [vmem:[%s233 + $0x18] sm:$0xf]
      %v241 = vld [vmem:[%s233 + $0x1c] sm:$0xf]
      %v250 = vunpack.c.l.b16 %v234
      %v251 = vunpack.c.l.b16 %v235
      %v252 = vunpack.c.l.b16 %v236
      %v253 = vunpack.c.l.b16 %v237
      %v254 = vunpack.c.l.b16 %v238
      %v255 = vunpack.c.l.b16 %v239
      %v256 = vunpack.c.l.b16 %v240
      %v257 = vunpack.c.l.b16 %v241
      %v258 = vpack.c.b16 %v251, %v250
      %v259 = vpack.c.b16 %v253, %v252
      %v260 = vpack.c.b16 %v255, %v254
      %v261 = vpack.c.b16 %v257, %v256
      %v267 = vsel %vm215, %v232, 0
      %269 = vmatpush.bf16.msra.mxu0 0
      %270 = vmatpush.bf16.msra.mxu0 0
      %271 = vmatpush.bf16.msra.mxu0 0
      %272 = vmatpush.bf16.msra.mxu0 0
      %273 = vmatpush.bf16.msra.mxu0 %v261
      %274 = vmatpush.bf16.msra.mxu0 %v260
      %275 = vmatpush.bf16.msra.mxu0 %v259
      %276 = vmatpush.bf16.msra.mxu0 %v258
      %277 = vmatmul.bf16.gmra.mxu0 %v267
      %v278 = vpop.f32.mrf.mxu0
      %v279 = vadd.f32 0.0, %v278
      %v280 = vpop.f32.mrf.mxu0
      %v281 = vadd.f32 0.0, %v280
      %282 = vdwg.mxu0
      %v291 = vunpack.c.l.b16 %v222
      %v292 = vunpack.c.l.b16 %v223
      %v293 = vunpack.c.l.b16 %v224
      %v294 = vunpack.c.l.b16 %v225
      %v295 = vunpack.c.l.b16 %v226
      %v296 = vunpack.c.l.b16 %v227
      %v297 = vunpack.c.l.b16 %v228
      %v298 = vunpack.c.l.b16 %v229
      %v299 = vpack.c.b16 %v292, %v291
      %v300 = vpack.c.b16 %v294, %v293
      %v301 = vpack.c.b16 %v296, %v295
      %v302 = vpack.c.b16 %v298, %v297
      %v308 = vsel %vm215, %v221, 0
      %310 = vmatpush.bf16.msra.mxu0 0
      %311 = vmatpush.bf16.msra.mxu0 0
      %312 = vmatpush.bf16.msra.mxu0 0
      %313 = vmatpush.bf16.msra.mxu0 0
      %314 = vmatpush.bf16.msra.mxu0 %v302
      %315 = vmatpush.bf16.msra.mxu0 %v301
      %316 = vmatpush.bf16.msra.mxu0 %v300
      %317 = vmatpush.bf16.msra.mxu0 %v299
      %318 = vmatmul.bf16.gmra.mxu0 %v308
      %v319 = vpop.f32.mrf.mxu0
      %v320 = vadd.f32 %v279, %v319
      %v321 = vpop.f32.mrf.mxu0
      %v322 = vadd.f32 %v281, %v321
      %323 = vdwg.mxu0
      %v324 = vld [vmem:[#allocation2 + $0x2] sm:$0xff]
      %v325 = vld [vmem:[#allocation2 + $0xa] sm:$0xff]
      %v326 = vpack.c.bf16 %v325, %v324
      %s327 = scalar_lea.vmem %s1, 64
      %v328 = vld [vmem:[%s327] sm:$0xf]
      %v329 = vld [vmem:[%s327 + $0x4] sm:$0xf]
      %v330 = vld [vmem:[%s327 + $0x8] sm:$0xf]
      %v331 = vld [vmem:[%s327 + $0xc] sm:$0xf]
      %v332 = vld [vmem:[%s327 + $0x10] sm:$0xf]
      %v333 = vld [vmem:[%s327 + $0x14] sm:$0xf]
      %v334 = vld [vmem:[%s327 + $0x18] sm:$0xf]
      %v335 = vld [vmem:[%s327 + $0x1c] sm:$0xf]
      %v344 = vunpack.c.l.b16 %v328
      %v345 = vunpack.c.l.b16 %v329
      %v346 = vunpack.c.l.b16 %v330
      %v347 = vunpack.c.l.b16 %v331
      %v348 = vunpack.c.l.b16 %v332
      %v349 = vunpack.c.l.b16 %v333
      %v350 = vunpack.c.l.b16 %v334
      %v351 = vunpack.c.l.b16 %v335
      %v352 = vpack.c.b16 %v345, %v344
      %v353 = vpack.c.b16 %v347, %v346
      %v354 = vpack.c.b16 %v349, %v348
      %v355 = vpack.c.b16 %v351, %v350
      %v361 = vsel %vm215, %v326, 0
      %363 = vmatpush.bf16.msra.mxu0 0
      %364 = vmatpush.bf16.msra.mxu0 0
      %365 = vmatpush.bf16.msra.mxu0 0
      %366 = vmatpush.bf16.msra.mxu0 0
      %367 = vmatpush.bf16.msra.mxu0 %v355
      %368 = vmatpush.bf16.msra.mxu0 %v354
      %369 = vmatpush.bf16.msra.mxu0 %v353
      %370 = vmatpush.bf16.msra.mxu0 %v352
      %371 = vmatmul.bf16.gmra.mxu0 %v361
      %v372 = vpop.f32.mrf.mxu0
      %v373 = vadd.f32 0.0, %v372
      %v374 = vpop.f32.mrf.mxu0
      %v375 = vadd.f32 0.0, %v374
      %376 = vdwg.mxu0
      %v377 = vadd.f32 %v320, %v373
      %v378 = vadd.f32 %v322, %v375
      %v380 = vperm.slane %v218, 0
      %v382 = vadd.f32 %v377, %v380
      %v383 = vadd.f32 %v378, %v380
      %384 = vst.msk [vmem:[%s204] sm:$0xff] %vm215, %v382
      %385 = vst.msk [vmem:[%s204 + $0x8] sm:$0xff] %vm215, %v383
      %v386 = vsel %vm215, %v382, 0.0
      %v387 = vsel %vm215, %v383, 0.0
      %v388 = vadd.f32 %v386, %v387
      %v389 = vrot.slane %v388, 4
      %v390 = vadd.f32 %v388, %v389
      %v391 = vrot.slane %v390, 2
      %v392 = vadd.f32 %v390, %v391
      %v393 = vrot.slane %v392, 1
      %v394 = vadd.f32 %v392, %v393
      %395 = vst.msk [vmem:[%s208] sm:$0x1] %vm212, %v394
      %v396 = vmul.f32 %v382, %v382
      %v397 = vmul.f32 %v383, %v383
      %v398 = vsel %vm215, %v396, 0.0
      %v399 = vsel %vm215, %v397, 0.0
      %v400 = vadd.f32 %v398, %v399
      %v401 = vrot.slane %v400, 4
      %v402 = vadd.f32 %v400, %v401
      %v403 = vrot.slane %v402, 2
      %v404 = vadd.f32 %v402, %v403
      %v405 = vrot.slane %v404, 1
      %v406 = vadd.f32 %v404, %v405
      %407 = vst.msk [vmem:[%s208 + $0x1] sm:$0x1] %vm212, %v406
      %p408 = scmp.lt.s32.totalorder %s16, 1
      %s409 = scalar_select %p408, %s16, 1
      %s410 = smul.addr %s409, 2
      %s411 = smul.addr %s410, 8
      %s412 = scalar_lea.vmem %s3, %s411
      %p413 = scmp.lt.s32.totalorder %s16, 1
      %s414 = scalar_select %p413, %s16, 1
      %s415 = smul.addr %s414, 2
      %s416 = scalar_lea.vmem %s4, %s415
      // Predicated region
      $region33: #{resblock_forward.3} parent=31 // pred_check
        %p417 = pneg %p102
      $region34: #{resblock_forward.3} parent=31 // pred_check_branch
        %419 = sbr.rel (%p417) target = $region36
      $region35: #{resblock_forward.3} parent=31 // pred_region
        _
      $region36: #{resblock_forward.3} parent=31 // pred_fallthru
        _
      // Predicated region
      $region37: #{resblock_forward.3} parent=31 // pred_check
        %p420 = pneg %p128
      $region38: #{resblock_forward.3} parent=31 // pred_check_branch
        %422 = sbr.rel (%p420) target = $region40
      $region39: #{resblock_forward.3} parent=31 // pred_region
        _
      $region40: #{resblock_forward.3} parent=31 // pred_fallthru
        _
    $region32: #{resblock_forward.3} parent=5 // pred_fallthru
      _
    %p423 = scmp.le.s32.totalorder 2, %s11
    // Predicated region
    $region41: #{resblock_forward.3} parent=5 // pred_check
      %p424 = pneg %p423
    $region42: #{resblock_forward.3} parent=5 // pred_check_branch
      %426 = sbr.rel (%p424) target = $region44
    $region43: #{resblock_forward.3} parent=5 // pred_region
      %s427 = ssub.s32 %s11, 2
      // Predicated region
      $region45: #{resblock_forward.3} parent=43 // pred_check
        %p428 = pneg %p108
      $region46: #{resblock_forward.3} parent=43 // pred_check_branch
        %430 = sbr.rel (%p428) target = $region48
      $region47: #{resblock_forward.3} parent=43 // pred_region
        %p431 = scmp.lt.s32.totalorder %s17, 1
        %s432 = scalar_select %p431, %s17, 1
        %s433 = smul.addr %s432, 2
        %s434 = smul.addr %s433, 8
        %s435 = scalar_lea.vmem %s3, %s434
      $region48: #{resblock_forward.3} parent=43 // pred_fallthru
        _
      // Predicated region
      $region49: #{resblock_forward.3} parent=43 // pred_check
        %p436 = pneg %p134
      $region50: #{resblock_forward.3} parent=43 // pred_check_branch
        %438 = sbr.rel (%p436) target = $region52
      $region51: #{resblock_forward.3} parent=43 // pred_region
        %p439 = scmp.lt.s32.totalorder %s17, 1
        %s440 = scalar_select %p439, %s17, 1
        %s441 = smul.addr %s440, 2
        %s442 = scalar_lea.vmem %s4, %s441
      $region52: #{resblock_forward.3} parent=43 // pred_fallthru
        _
    $region44: #{resblock_forward.3} parent=5 // pred_fallthru
      _
  $region6: #{resblock_forward.3} parent=0 // loop_footer
    %s15 = sadd.s32 1, %s11
  $region7: #{resblock_forward.3} parent=0 // loop_footer_branch
    %10 = sbr.rel target = $region3
  $region8: #{resblock_forward.3} parent=0 // loop_exit
    _

// kernel: tile.38
$region0: #{tile.38}
  #allocation0 [shape = 's32[1]{0}', space=sflag, size = 0x4, scoped, tag = 'scoped memory for tile.38']
  %s0 = inlined_call_operand.vmem [shape: f32[8], index: 0, kind: input, shape index: {}]
  %s1 = inlined_call_operand.vmem [shape: f32[16,8], index: 1, kind: output, shape index: {}]
  // Predicated region
  $region2: #{tile.38} parent=0 // pred_check
    _
  $region3: #{tile.38} parent=0 // pred_check_branch
    %3 = sbr.rel (0) target = $region5
  $region4: #{tile.38} parent=0 // pred_region
    _
  $region5: #{tile.38} parent=0 // pred_fallthru
    _
  %v4 = vld [vmem:[%s0] ss:$0 sm:$0xff]
  %5 = vst [vmem:[%s1] sm:$0xff] %v4
  %s6 = scalar_lea.vmem %s1, 8
  %7 = vst [vmem:[%s6] sm:$0xff] %v4

// kernel: tile.39
$region0: #{tile.39}
  %s0 = inlined_call_operand.vmem [shape: f32[16,8], index: 0, kind: input, shape index: {}]
  %s1 = inlined_call_operand.vmem [shape: f32[1,128], index: 1, kind: output, shape index: {}]
  $region1: #{tile.39} parent=0
    #allocation0 [shape = 'u8[4096]{0}', space=vmem, size = 0x1000, scoped, tag = 'scoped mem for output reshape']
    %v2 = vld [vmem:[%s0] sm:$0x1]
    %vm3 = vcmask 64512
    %4 = vst.msk [vmem:[#allocation0] sm:$0x1] %vm3, %v2
    %s5 = scalar_lea.vmem %s0, 15
    %v6 = vld [vmem:[%s5] sm:$0x1]
    %7 = vrot.lane.b32.xlu0 %v6, 120
    %v8 = vpop.permute.xlu0 %7
    %vm9 = vcmask 1048512
    %10 = vst.msk [vmem:[#allocation0] sm:$0x1] %vm9, %v8
    %s11 = scalar_lea.vmem %s0, 14
    %v12 = vld [vmem:[%s11] sm:$0x1]
    %13 = vrot.lane.b32.xlu0 %v12, 112
    %v14 = vpop.permute.xlu0 %13
    %vm15 = vcmask 982912
    %16 = vst.msk [vmem:[#allocation0] sm:$0x1] %vm15, %v14
    %s17 = scalar_lea.vmem %s0, 13
    %v18 = vld [vmem:[%s17] sm:$0x1]
    %19 = vrot.lane.b32.xlu0 %v18, 104
    %v20 = vpop.permute.xlu0 %19
    %vm21 = vcmask 917312
    %22 = vst.msk [vmem:[#allocation0] sm:$0x1] %vm21, %v20
    %s23 = scalar_lea.vmem %s0, 12
    %v24 = vld [vmem:[%s23] sm:$0x1]
    %25 = vrot.lane.b32.xlu0 %v24, 96
    %v26 = vpop.permute.xlu0 %25
    %vm27 = vcmask 851712
    %28 = vst.msk [vmem:[#allocation0] sm:$0x1] %vm27, %v26
    %s29 = scalar_lea.vmem %s0, 11
    %v30 = vld [vmem:[%s29] sm:$0x1]
    %31 = vrot.lane.b32.xlu0 %v30, 88
    %v32 = vpop.permute.xlu0 %31
    %vm33 = vcmask 786112
    %34 = vst.msk [vmem:[#allocation0] sm:$0x1] %vm33, %v32
    %s35 = scalar_lea.vmem %s0, 10
    %v36 = vld [vmem:[%s35] sm:$0x1]
    %37 = vrot.lane.b32.xlu0 %v36, 80
    %v38 = vpop.permute.xlu0 %37
    %vm39 = vcmask 720512
    %40 = vst.msk [vmem:[#allocation0] sm:$0x1] %vm39, %v38
    %s41 = scalar_lea.vmem %s0, 9
    %v42 = vld [vmem:[%s41] sm:$0x1]
    %43 = vrot.lane.b32.xlu0 %v42, 72
    %v44 = vpop.permute.xlu0 %43
    %vm45 = vcmask 654912
    %46 = vst.msk [vmem:[#allocation0] sm:$0x1] %vm45, %v44
    %s47 = scalar_lea.vmem %s0, 8
    %v48 = vld [vmem:[%s47] sm:$0x1]
    %49 = vrot.lane.b32.xlu0 %v48, 64
    %v50 = vpop.permute.xlu0 %49
    %vm51 = vcmask 589312
    %52 = vst.msk [vmem:[#allocation0] sm:$0x1] %vm51, %v50
    %s53 = scalar_lea.vmem %s0, 7
    %v54 = vld [vmem:[%s53] sm:$0x1]
    %55 = vrot.lane.b32.xlu0 %v54, 56
    %v56 = vpop.permute.xlu0 %55
    %vm57 = vcmask 523712
    %58 = vst.msk [vmem:[#allocation0] sm:$0x1] %vm57, %v56
    %s59 = scalar_lea.vmem %s0, 6
    %v60 = vld [vmem:[%s59] sm:$0x1]
    %61 = vrot.lane.b32.xlu0 %v60, 48
    %v62 = vpop.permute.xlu0 %61
    %vm63 = vcmask 458112
    %64 = vst.msk [vmem:[#allocation0] sm:$0x1] %vm63, %v62
    %s65 = scalar_lea.vmem %s0, 5
    %v66 = vld [vmem:[%s65] sm:$0x1]
    %67 = vrot.lane.b32.xlu0 %v66, 40
    %v68 = vpop.permute.xlu0 %67
    %vm69 = vcmask 392512
    %70 = vst.msk [vmem:[#allocation0] sm:$0x1] %vm69, %v68
    %s71 = scalar_lea.vmem %s0, 4
    %v72 = vld [vmem:[%s71] sm:$0x1]
    %73 = vrot.lane.b32.xlu0 %v72, 32
    %v74 = vpop.permute.xlu0 %73
    %vm75 = vcmask 326912
    %76 = vst.msk [vmem:[#allocation0] sm:$0x1] %vm75, %v74
    %s77 = scalar_lea.vmem %s0, 3
    %v78 = vld [vmem:[%s77] sm:$0x1]
    %79 = vrot.lane.b32.xlu0 %v78, 24
    %v80 = vpop.permute.xlu0 %79
    %vm81 = vcmask 261312
    %82 = vst.msk [vmem:[#allocation0] sm:$0x1] %vm81, %v80
    %s83 = scalar_lea.vmem %s0, 2
    %v84 = vld [vmem:[%s83] sm:$0x1]
    %85 = vrot.lane.b32.xlu0 %v84, 16
    %v86 = vpop.permute.xlu0 %85
    %vm87 = vcmask 195712
    %88 = vst.msk [vmem:[#allocation0] sm:$0x1] %vm87, %v86
    %s89 = scalar_lea.vmem %s0, 1
    %v90 = vld [vmem:[%s89] sm:$0x1]
    %91 = vrot.lane.b32.xlu0 %v90, 8
    %v92 = vpop.permute.xlu0 %91
    %vm93 = vcmask 130112
    %94 = vst.msk [vmem:[#allocation0] sm:$0x1] %vm93, %v92
    %s96 = ssub.s32 2, 1
    %v97 = vld [vmem:[#allocation0] sm:%s96]
    %s99 = ssub.s32 2, 1
    %100 = vst [vmem:[%s1] sm:%s99] %v97

// kernel: resblock_forward.4
$region0: #{resblock_forward.4}
  #allocation0 [shape = 'u32[]', space=smem, size = 0x4, offset = 0x4, fixed_abs, tag = 'smem constant byte address 0x4 - core index']
  #allocation1 [shape = 'u32[72,128]{1,0:T(1,128)}', space=vmem, size = 0x9000, scoped, tag = 'internal scratch']
  #allocation2 [shape = 'f32[18,64]{1,0:T(8,128)}', space=vmem, size = 0x3000, scoped, tag = 'scratch operand']
  %s0 = inlined_call_operand.vmem [shape: f32[2,16,64], index: 0, kind: input, shape index: {}]
  %s1 = inlined_call_operand.vmem [shape: f32[2,16,64], index: 1, kind: input, shape index: {}]
  %s2 = inlined_call_operand.vmem [shape: f32[1,64], index: 2, kind: input, shape index: {}]
  %s3 = inlined_call_operand.vmem [shape: f32[1,64], index: 3, kind: input, shape index: {}]
  %s4 = inlined_call_operand.vmem [shape: bf16[3,64,128], index: 4, kind: input, shape index: {}]
  %s5 = inlined_call_operand.vmem [shape: f32[1,128], index: 5, kind: input, shape index: {}]
  %s6 = inlined_call_operand.vmem [shape: f32[2,16,128], index: 6, kind: output, shape index: {0}]
  %s7 = inlined_call_operand.vmem [shape: f32[2,2,128], index: 7, kind: output, shape index: {1}]
  %8 = xla_tuple %s6, %s7
  %s9 = sld [smem:[#allocation0]]
  $region65: #{resblock_forward.4} parent=0
    _
  %s11 = ssub.s32 1, %s9
  %s12 = scalar_select 0, %s11, %s9
  loop: start=0, step=1, limit=4
  $region2: #{resblock_forward.4} parent=0 // loop_pre_header
    _
  $region3: #{resblock_forward.4} parent=0 // loop_header
    %s14 = sphi 0, %s18
    %p15 = scmp.ge.s32.totalorder %s14, 4
    %s24 = sphi 0, %s26
    %s27 = sphi 0, %s24
    %s28 = sphi 0, %s27
    %s44 = sphi 0, %s28
    %s50 = sphi 0, %s52
    %s53 = sphi 0, %s50
    %s54 = sphi 0, %s53
    %s70 = sphi 0, %s54
    %s74 = sphi 0, %s74
    %s76 = sphi 0, %s74
    %s77 = sphi 0, %s76
    %s91 = sphi 0, %s77
    %s95 = sphi 0, %s95
    %s97 = sphi 0, %s95
    %s98 = sphi 0, %s97
    %s112 = sphi 0, %s98
    %s116 = sphi 0, %s116
    %s118 = sphi 0, %s116
    %s119 = sphi 0, %s118
    %s133 = sphi 0, %s119
    %s137 = sphi 0, %s137
    %s139 = sphi 0, %s137
    %s140 = sphi 0, %s139
    %s154 = sphi 0, %s140
    %s160 = sphi 0, %s162
    %s163 = sphi 0, %s160
    %s164 = sphi 0, %s163
    %s180 = sphi 0, %s164
    %s186 = sphi 0, %s188
    %s189 = sphi 0, %s186
    %s190 = sphi 0, %s189
    %s206 = sphi 0, %s190
  $region4: #{resblock_forward.4} parent=0 // loop_header_branch
    %17 = sbr.rel (%p15) target = $region8
  $region5: #{resblock_forward.4} parent=0 // loop_body
    %s19 = ssub.s32 %s14, 1
    %s20 = ssub.s32 %s14, 2
    %s21 = sadd.s32 %s14, 1
    %s22 = ssub.s32 %s14, %s21
    %p23 = scmp.eq.s32.totalorder %s22, 0
    %s25 = sadd.s32 %s24, 1
    %s26 = scalar_select %p23, %s24, %s25
    %p29 = pneg %p23
    %p30 = scmp.eq.s32.totalorder %s14, 1
    %p31 = por %p29, %p30
    %p32 = scmp.ne.s32.totalorder %s24, %s27
    %p33 = scmp.eq.s32.totalorder %s14, 0
    %p34 = por %p32, %p33
    %p35 = scmp.ne.s32.totalorder %s24, %s27
    %p36 = scmp.eq.s32.totalorder %s19, 1
    %p37 = por %p35, %p36
    %p38 = scmp.ne.s32.totalorder %s27, %s28
    %p39 = scmp.eq.s32.totalorder %s19, 0
    %p40 = por %p38, %p39
    %p41 = scmp.ne.s32.totalorder %s27, %s28
    %p42 = scmp.eq.s32.totalorder %s20, 1
    %p43 = por %p41, %p42
    %p45 = scmp.ne.s32.totalorder %s28, %s44
    %p46 = scmp.eq.s32.totalorder %s20, 0
    %p47 = por %p45, %p46
    %s48 = ssub.s32 %s14, %s21
    %p49 = scmp.eq.s32.totalorder %s48, 0
    %s51 = sadd.s32 %s50, 1
    %s52 = scalar_select %p49, %s50, %s51
    %p55 = pneg %p49
    %p56 = scmp.eq.s32.totalorder %s14, 1
    %p57 = por %p55, %p56
    %p58 = scmp.ne.s32.totalorder %s50, %s53
    %p59 = scmp.eq.s32.totalorder %s14, 0
    %p60 = por %p58, %p59
    %p61 = scmp.ne.s32.totalorder %s50, %s53
    %p62 = scmp.eq.s32.totalorder %s19, 1
    %p63 = por %p61, %p62
    %p64 = scmp.ne.s32.totalorder %s53, %s54
    %p65 = scmp.eq.s32.totalorder %s19, 0
    %p66 = por %p64, %p65
    %p67 = scmp.ne.s32.totalorder %s53, %s54
    %p68 = scmp.eq.s32.totalorder %s20, 1
    %p69 = por %p67, %p68
    %p71 = scmp.ne.s32.totalorder %s54, %s70
    %p72 = scmp.eq.s32.totalorder %s20, 0
    %p73 = por %p71, %p72
    %s75 = sadd.s32 %s74, 1
    %p78 = scmp.eq.s32.totalorder %s14, 1
    %p79 = scmp.ne.s32.totalorder %s74, %s76
    %p80 = scmp.eq.s32.totalorder %s14, 0
    %p81 = por %p79, %p80
    %p82 = scmp.ne.s32.totalorder %s74, %s76
    %p83 = scmp.eq.s32.totalorder %s19, 1
    %p84 = por %p82, %p83
    %p85 = scmp.ne.s32.totalorder %s76, %s77
    %p86 = scmp.eq.s32.totalorder %s19, 0
    %p87 = por %p85, %p86
    %p88 = scmp.ne.s32.totalorder %s76, %s77
    %p89 = scmp.eq.s32.totalorder %s20, 1
    %p90 = por %p88, %p89
    %p92 = scmp.ne.s32.totalorder %s77, %s91
    %p93 = scmp.eq.s32.totalorder %s20, 0
    %p94 = por %p92, %p93
    %s96 = sadd.s32 %s95, 1
    %p99 = scmp.eq.s32.totalorder %s14, 1
    %p100 = scmp.ne.s32.totalorder %s95, %s97
    %p101 = scmp.eq.s32.totalorder %s14, 0
    %p102 = por %p100, %p101
    %p103 = scmp.ne.s32.totalorder %s95, %s97
    %p104 = scmp.eq.s32.totalorder %s19, 1
    %p105 = por %p103, %p104
    %p106 = scmp.ne.s32.totalorder %s97, %s98
    %p107 = scmp.eq.s32.totalorder %s19, 0
    %p108 = por %p106, %p107
    %p109 = scmp.ne.s32.totalorder %s97, %s98
    %p110 = scmp.eq.s32.totalorder %s20, 1
    %p111 = por %p109, %p110
    %p113 = scmp.ne.s32.totalorder %s98, %s112
    %p114 = scmp.eq.s32.totalorder %s20, 0
    %p115 = por %p113, %p114
    %s117 = sadd.s32 %s116, 1
    %p120 = scmp.eq.s32.totalorder %s14, 1
    %p121 = scmp.ne.s32.totalorder %s116, %s118
    %p122 = scmp.eq.s32.totalorder %s14, 0
    %p123 = por %p121, %p122
    %p124 = scmp.ne.s32.totalorder %s116, %s118
    %p125 = scmp.eq.s32.totalorder %s19, 1
    %p126 = por %p124, %p125
    %p127 = scmp.ne.s32.totalorder %s118, %s119
    %p128 = scmp.eq.s32.totalorder %s19, 0
    %p129 = por %p127, %p128
    %p130 = scmp.ne.s32.totalorder %s118, %s119
    %p131 = scmp.eq.s32.totalorder %s20, 1
    %p132 = por %p130, %p131
    %p134 = scmp.ne.s32.totalorder %s119, %s133
    %p135 = scmp.eq.s32.totalorder %s20, 0
    %p136 = por %p134, %p135
    %s138 = sadd.s32 %s137, 1
    %p141 = scmp.eq.s32.totalorder %s14, 1
    %p142 = scmp.ne.s32.totalorder %s137, %s139
    %p143 = scmp.eq.s32.totalorder %s14, 0
    %p144 = por %p142, %p143
    %p145 = scmp.ne.s32.totalorder %s137, %s139
    %p146 = scmp.eq.s32.totalorder %s19, 1
    %p147 = por %p145, %p146
    %p148 = scmp.ne.s32.totalorder %s139, %s140
    %p149 = scmp.eq.s32.totalorder %s19, 0
    %p150 = por %p148, %p149
    %p151 = scmp.ne.s32.totalorder %s139, %s140
    %p152 = scmp.eq.s32.totalorder %s20, 1
    %p153 = por %p151, %p152
    %p155 = scmp.ne.s32.totalorder %s140, %s154
    %p156 = scmp.eq.s32.totalorder %s20, 0
    %p157 = por %p155, %p156
    %s158 = ssub.s32 %s14, %s21
    %p159 = scmp.eq.s32.totalorder %s158, 0
    %s161 = sadd.s32 %s160, 1
    %s162 = scalar_select %p159, %s160, %s161
    %p165 = pneg %p159
    %p166 = scmp.eq.s32.totalorder %s14, 1
    %p167 = por %p165, %p166
    %p168 = scmp.ne.s32.totalorder %s160, %s163
    %p169 = scmp.eq.s32.totalorder %s14, 0
    %p170 = por %p168, %p169
    %p171 = scmp.ne.s32.totalorder %s160, %s163
    %p172 = scmp.eq.s32.totalorder %s19, 1
    %p173 = por %p171, %p172
    %p174 = scmp.ne.s32.totalorder %s163, %s164
    %p175 = scmp.eq.s32.totalorder %s19, 0
    %p176 = por %p174, %p175
    %p177 = scmp.ne.s32.totalorder %s163, %s164
    %p178 = scmp.eq.s32.totalorder %s20, 1
    %p179 = por %p177, %p178
    %p181 = scmp.ne.s32.totalorder %s164, %s180
    %p182 = scmp.eq.s32.totalorder %s20, 0
    %p183 = por %p181, %p182
    %s184 = ssub.s32 %s14, %s21
    %p185 = scmp.eq.s32.totalorder %s184, 0
    %s187 = sadd.s32 %s186, 1
    %s188 = scalar_select %p185, %s186, %s187
    %p191 = pneg %p185
    %p192 = scmp.eq.s32.totalorder %s14, 1
    %p193 = por %p191, %p192
    %p194 = scmp.ne.s32.totalorder %s186, %s189
    %p195 = scmp.eq.s32.totalorder %s14, 0
    %p196 = por %p194, %p195
    %p197 = scmp.ne.s32.totalorder %s186, %s189
    %p198 = scmp.eq.s32.totalorder %s19, 1
    %p199 = por %p197, %p198
    %p200 = scmp.ne.s32.totalorder %s189, %s190
    %p201 = scmp.eq.s32.totalorder %s19, 0
    %p202 = por %p200, %p201
    %p203 = scmp.ne.s32.totalorder %s189, %s190
    %p204 = scmp.eq.s32.totalorder %s20, 1
    %p205 = por %p203, %p204
    %p207 = scmp.ne.s32.totalorder %s190, %s206
    %p208 = scmp.eq.s32.totalorder %s20, 0
    %p209 = por %p207, %p208
    %p210 = scmp.le.s32.totalorder 1, %s14
    %p211 = scmp.lt.s32.totalorder %s14, 3
    %p212 = pnand %p210, %p211
    %p213 = pneg %p212
    // Predicated region
    $region9: #{resblock_forward.4} parent=5 // pred_check
      _
    $region10: #{resblock_forward.4} parent=5 // pred_check_branch
      %215 = sbr.rel (%p212) target = $region12
    $region11: #{resblock_forward.4} parent=5 // pred_region
      %s216 = ssub.s32 %s14, 1
      // Predicated region
      $region13: #{resblock_forward.4} parent=11 // pred_check
        %p217 = pneg %p87
      $region14: #{resblock_forward.4} parent=11 // pred_check_branch
        %219 = sbr.rel (%p217) target = $region16
      $region15: #{resblock_forward.4} parent=11 // pred_region
        _
      $region16: #{resblock_forward.4} parent=11 // pred_fallthru
        _
      // Predicated region
      $region17: #{resblock_forward.4} parent=11 // pred_check
        %p220 = pneg %p108
      $region18: #{resblock_forward.4} parent=11 // pred_check_branch
        %222 = sbr.rel (%p220) target = $region20
      $region19: #{resblock_forward.4} parent=11 // pred_region
        _
      $region20: #{resblock_forward.4} parent=11 // pred_fallthru
        _
      // Predicated region
      $region21: #{resblock_forward.4} parent=11 // pred_check
        %p223 = pneg %p129
      $region22: #{resblock_forward.4} parent=11 // pred_check_branch
        %225 = sbr.rel (%p223) target = $region24
      $region23: #{resblock_forward.4} parent=11 // pred_region
        _
      $region24: #{resblock_forward.4} parent=11 // pred_fallthru
        _
      // Predicated region
      $region25: #{resblock_forward.4} parent=11 // pred_check
        %p226 = pneg %p150
      $region26: #{resblock_forward.4} parent=11 // pred_check_branch
        %228 = sbr.rel (%p226) target = $region28
      $region27: #{resblock_forward.4} parent=11 // pred_region
        _
      $region28: #{resblock_forward.4} parent=11 // pred_fallthru
        _
    $region12: #{resblock_forward.4} parent=5 // pred_fallthru
      _
    %p229 = scmp.lt.s32.totalorder %s14, 2
    // Predicated region
    $region29: #{resblock_forward.4} parent=5 // pred_check
      %p230 = pneg %p229
    $region30: #{resblock_forward.4} parent=5 // pred_check_branch
      %232 = sbr.rel (%p230) target = $region32
    $region31: #{resblock_forward.4} parent=5 // pred_region
      // Predicated region
      $region33: #{resblock_forward.4} parent=31 // pred_check
        %p233 = pneg %p34
      $region34: #{resblock_forward.4} parent=31 // pred_check_branch
        %235 = sbr.rel (%p233) target = $region36
      $region35: #{resblock_forward.4} parent=31 // pred_region
        %p236 = scmp.lt.s32.totalorder %s14, 1
        %s237 = scalar_select %p236, %s14, 1
        %s238 = smul.addr %s237, 2
        %s239 = smul.addr %s238, 8
        %s240 = scalar_lea.vmem %s0, %s239
      $region36: #{resblock_forward.4} parent=31 // pred_fallthru
        _
      // Predicated region
      $region37: #{resblock_forward.4} parent=31 // pred_check
        %p241 = pneg %p60
      $region38: #{resblock_forward.4} parent=31 // pred_check_branch
        %243 = sbr.rel (%p241) target = $region40
      $region39: #{resblock_forward.4} parent=31 // pred_region
        %p244 = scmp.lt.s32.totalorder %s14, 1
        %s245 = scalar_select %p244, %s14, 1
        %s246 = smul.addr %s245, 2
        %s247 = smul.addr %s246, 8
        %s248 = scalar_lea.vmem %s1, %s247
      $region40: #{resblock_forward.4} parent=31 // pred_fallthru
        _
    $region32: #{resblock_forward.4} parent=5 // pred_fallthru
      _
    %p249 = scmp.le.s32.totalorder 1, %s14
    %p250 = scmp.lt.s32.totalorder %s14, 3
    %p251 = pnand %p249, %p250
    %p252 = pneg %p251
    // Predicated region
    $region41: #{resblock_forward.4} parent=5 // pred_check
      _
    $region42: #{resblock_forward.4} parent=5 // pred_check_branch
      %254 = sbr.rel (%p251) target = $region44
    $region43: #{resblock_forward.4} parent=5 // pred_region
      %s255 = ssub.s32 %s14, 1
      %p256 = scmp.lt.s32.totalorder %s19, 1
      %s257 = scalar_select %p256, %s19, 1
      %s258 = smul.addr %s257, 2
      %s259 = smul.addr %s258, 8
      %s260 = scalar_lea.vmem %s0, %s259
      %p261 = pneg %p40
      %p262 = pneg %p37
      %p263 = scmp.lt.s32.totalorder %s19, 1
      %s264 = scalar_select %p263, %s19, 1
      %s265 = smul.addr %s264, 2
      %s266 = smul.addr %s265, 8
      %s267 = scalar_lea.vmem %s1, %s266
      %p268 = pneg %p66
      %p269 = pneg %p63
      %p270 = pneg %p87
      %p271 = pneg %p84
      %p272 = pneg %p108
      %p273 = pneg %p105
      %p274 = pneg %p129
      %p275 = pneg %p126
      %p276 = pneg %p150
      %p277 = pneg %p147
      %p278 = pneg %p176
      %p279 = pneg %p173
      %p280 = scmp.lt.s32.totalorder %s19, 1
      %s281 = scalar_select %p280, %s19, 1
      %s282 = smul.addr %s281, 2
      %s283 = smul.addr %s282, 8
      %s284 = scalar_lea.vmem %s6, %s283
      %p285 = pneg %p202
      %p286 = pneg %p199
      %p287 = scmp.lt.s32.totalorder %s19, 1
      %s288 = scalar_select %p287, %s19, 1
      %s289 = smul.addr %s288, 2
      %s290 = scalar_lea.vmem %s7, %s289
      %p291 = scmp.lt.s32.totalorder %s19, 1
      %s292 = scalar_select %p291, %s19, 1
      %s293 = smul.addr %s292, 2
      %s294 = smul.addr %s293, 8
      %s295 = scalar_lea.vmem %s0, %s294
      %p296 = scmp.lt.s32.totalorder %s19, 1
      %s297 = scalar_select %p296, %s19, 1
      %s298 = smul.addr %s297, 2
      %s299 = smul.addr %s298, 8
      %s300 = scalar_lea.vmem %s1, %s299
      %p301 = scmp.lt.s32.totalorder %s19, 1
      %s302 = scalar_select %p301, %s19, 1
      %s303 = smul.addr %s302, 2
      %s304 = smul.addr %s303, 8
      %s305 = scalar_lea.vmem %s6, %s304
      %p306 = scmp.lt.s32.totalorder %s19, 1
      %s307 = scalar_select %p306, %s19, 1
      %s308 = smul.addr %s307, 2
      %s309 = scalar_lea.vmem %s7, %s308
      %v311 = vld [vmem:[%s300] sm:$0xff]
      %v312 = vld [vmem:[%s300 + $0x8] sm:$0xff]
      %v313 = vld [vmem:[%s2] sm:$0x1]
      %v315 = vperm.slane %v313, 0
      %v317 = vmul.f32 %v311, %v315
      %v318 = vmul.f32 %v312, %v315
      %v319 = vld [vmem:[%s3] sm:$0x1]
      %v321 = vperm.slane %v319, 0
      %v323 = vadd.f32 %v317, %v321
      %v324 = vadd.f32 %v318, %v321
      %v325 = vmax.f32 %v323, 0.0
      %v326 = vmax.f32 %v324, 0.0
      %v327 = vld [vmem:[%s295] sm:$0xff]
      %v328 = vld [vmem:[%s295 + $0x8] sm:$0xff]
      %v329 = vadd.f32 %v325, %v327
      %v330 = vadd.f32 %v326, %v328
      %vm331 = vcmask 516096
      %332 = vst.msk [vmem:[#allocation2] sm:$0x1] %vm331, 0.0
      %333 = vst.msk [vmem:[#allocation2 + $0x11] sm:$0x1] %vm331, 0.0
      %vm334 = vcmask 523264
      %335 = vst.msk [vmem:[#allocation2 + $0x1] sm:$0xff] %vm334, %v329
      %336 = vst.msk [vmem:[#allocation2 + $0x9] sm:$0xff] %vm334, %v330
      %v337 = vld [vmem:[%s5] sm:$0x1]
      %v338 = vld [vmem:[#allocation2] sm:$0xff]
      %v339 = vld [vmem:[#allocation2 + $0x8] sm:$0xff]
      %v340 = vpack.c.bf16 %v339, %v338
      %v341 = vld [vmem:[%s4] sm:$0xf]
      %v342 = vld [vmem:[%s4 + $0x4] sm:$0xf]
      %v343 = vld [vmem:[%s4 + $0x8] sm:$0xf]
      %v344 = vld [vmem:[%s4 + $0xc] sm:$0xf]
      %v345 = vld [vmem:[%s4 + $0x10] sm:$0xf]
      %v346 = vld [vmem:[%s4 + $0x14] sm:$0xf]
      %v347 = vld [vmem:[%s4 + $0x18] sm:$0xf]
      %v348 = vld [vmem:[%s4 + $0x1c] sm:$0xf]
      %v349 = vld [vmem:[#allocation2 + $0x1] sm:$0xff]
      %v350 = vld [vmem:[#allocation2 + $0x9] sm:$0xff]
      %v351 = vpack.c.bf16 %v350, %v349
      %s352 = scalar_lea.vmem %s4, 32
      %v353 = vld [vmem:[%s352] sm:$0xf]
      %v354 = vld [vmem:[%s352 + $0x4] sm:$0xf]
      %v355 = vld [vmem:[%s352 + $0x8] sm:$0xf]
      %v356 = vld [vmem:[%s352 + $0xc] sm:$0xf]
      %v357 = vld [vmem:[%s352 + $0x10] sm:$0xf]
      %v358 = vld [vmem:[%s352 + $0x14] sm:$0xf]
      %v359 = vld [vmem:[%s352 + $0x18] sm:$0xf]
      %v360 = vld [vmem:[%s352 + $0x1c] sm:$0xf]
      %v369 = vunpack.c.l.b16 %v353
      %v370 = vunpack.c.l.b16 %v354
      %v371 = vunpack.c.l.b16 %v355
      %v372 = vunpack.c.l.b16 %v356
      %v373 = vunpack.c.l.b16 %v357
      %v374 = vunpack.c.l.b16 %v358
      %v375 = vunpack.c.l.b16 %v359
      %v376 = vunpack.c.l.b16 %v360
      %v377 = vpack.c.b16 %v370, %v369
      %v378 = vpack.c.b16 %v372, %v371
      %v379 = vpack.c.b16 %v374, %v373
      %v380 = vpack.c.b16 %v376, %v375
      %v386 = vsel %vm334, %v351, 0
      %388 = vmatpush.bf16.msra.mxu0 0
      %389 = vmatpush.bf16.msra.mxu0 0
      %390 = vmatpush.bf16.msra.mxu0 0
      %391 = vmatpush.bf16.msra.mxu0 0
      %392 = vmatpush.bf16.msra.mxu0 %v380
      %393 = vmatpush.bf16.msra.mxu0 %v379
      %394 = vmatpush.bf16.msra.mxu0 %v378
      %395 = vmatpush.bf16.msra.mxu0 %v377
      %396 = vmatmul.bf16.gmra.mxu0 %v386
      %v397 = vpop.f32.mrf.mxu0
      %v398 = vadd.f32 0.0, %v397
      %v399 = vpop.f32.mrf.mxu0
      %v400 = vadd.f32 0.0, %v399
      %401 = vdwg.mxu0
      %v410 = vunpack.c.l.b16 %v341
      %v411 = vunpack.c.l.b16 %v342
      %v412 = vunpack.c.l.b16 %v343
      %v413 = vunpack.c.l.b16 %v344
      %v414 = vunpack.c.l.b16 %v345
      %v415 = vunpack.c.l.b16 %v346
      %v416 = vunpack.c.l.b16 %v347
      %v417 = vunpack.c.l.b16 %v348
      %v418 = vpack.c.b16 %v411, %v410
      %v419 = vpack.c.b16 %v413, %v412
      %v420 = vpack.c.b16 %v415, %v414
      %v421 = vpack.c.b16 %v417, %v416
      %v427 = vsel %vm334, %v340, 0
      %429 = vmatpush.bf16.msra.mxu0 0
      %430 = vmatpush.bf16.msra.mxu0 0
      %431 = vmatpush.bf16.msra.mxu0 0
      %432 = vmatpush.bf16.msra.mxu0 0
      %433 = vmatpush.bf16.msra.mxu0 %v421
      %434 = vmatpush.bf16.msra.mxu0 %v420
      %435 = vmatpush.bf16.msra.mxu0 %v419
      %436 = vmatpush.bf16.msra.mxu0 %v418
      %437 = vmatmul.bf16.gmra.mxu0 %v427
      %v438 = vpop.f32.mrf.mxu0
      %v439 = vadd.f32 %v398, %v438
      %v440 = vpop.f32.mrf.mxu0
      %v441 = vadd.f32 %v400, %v440
      %442 = vdwg.mxu0
      %v443 = vld [vmem:[#allocation2 + $0x2] sm:$0xff]
      %v444 = vld [vmem:[#allocation2 + $0xa] sm:$0xff]
      %v445 = vpack.c.bf16 %v444, %v443
      %s446 = scalar_lea.vmem %s4, 64
      %v447 = vld [vmem:[%s446] sm:$0xf]
      %v448 = vld [vmem:[%s446 + $0x4] sm:$0xf]
      %v449 = vld [vmem:[%s446 + $0x8] sm:$0xf]
      %v450 = vld [vmem:[%s446 + $0xc] sm:$0xf]
      %v451 = vld [vmem:[%s446 + $0x10] sm:$0xf]
      %v452 = vld [vmem:[%s446 + $0x14] sm:$0xf]
      %v453 = vld [vmem:[%s446 + $0x18] sm:$0xf]
      %v454 = vld [vmem:[%s446 + $0x1c] sm:$0xf]
      %v463 = vunpack.c.l.b16 %v447
      %v464 = vunpack.c.l.b16 %v448
      %v465 = vunpack.c.l.b16 %v449
      %v466 = vunpack.c.l.b16 %v450
      %v467 = vunpack.c.l.b16 %v451
      %v468 = vunpack.c.l.b16 %v452
      %v469 = vunpack.c.l.b16 %v453
      %v470 = vunpack.c.l.b16 %v454
      %v471 = vpack.c.b16 %v464, %v463
      %v472 = vpack.c.b16 %v466, %v465
      %v473 = vpack.c.b16 %v468, %v467
      %v474 = vpack.c.b16 %v470, %v469
      %v480 = vsel %vm334, %v445, 0
      %482 = vmatpush.bf16.msra.mxu0 0
      %483 = vmatpush.bf16.msra.mxu0 0
      %484 = vmatpush.bf16.msra.mxu0 0
      %485 = vmatpush.bf16.msra.mxu0 0
      %486 = vmatpush.bf16.msra.mxu0 %v474
      %487 = vmatpush.bf16.msra.mxu0 %v473
      %488 = vmatpush.bf16.msra.mxu0 %v472
      %489 = vmatpush.bf16.msra.mxu0 %v471
      %490 = vmatmul.bf16.gmra.mxu0 %v480
      %v491 = vpop.f32.mrf.mxu0
      %v492 = vadd.f32 0.0, %v491
      %v493 = vpop.f32.mrf.mxu0
      %v494 = vadd.f32 0.0, %v493
      %495 = vdwg.mxu0
      %v496 = vadd.f32 %v439, %v492
      %v497 = vadd.f32 %v441, %v494
      %v499 = vperm.slane %v337, 0
      %v501 = vadd.f32 %v496, %v499
      %v502 = vadd.f32 %v497, %v499
      %503 = vst [vmem:[%s305] sm:$0xff] %v501
      %504 = vst [vmem:[%s305 + $0x8] sm:$0xff] %v502
      %v505 = vadd.f32 %v501, %v502
      %v506 = vrot.slane %v505, 4
      %v507 = vadd.f32 %v505, %v506
      %v508 = vrot.slane %v507, 2
      %v509 = vadd.f32 %v507, %v508
      %v510 = vrot.slane %v509, 1
      %v511 = vadd.f32 %v509, %v510
      %512 = vst [vmem:[%s309] sm:$0x1] %v511
      %v513 = vmul.f32 %v501, %v501
      %v514 = vmul.f32 %v502, %v502
      %v515 = vadd.f32 %v513, %v514
      %v516 = vrot.slane %v515, 4
      %v517 = vadd.f32 %v515, %v516
      %v518 = vrot.slane %v517, 2
      %v519 = vadd.f32 %v517, %v518
      %v520 = vrot.slane %v519, 1
      %v521 = vadd.f32 %v519, %v520
      %522 = vst [vmem:[%s309 + $0x1] sm:$0x1] %v521
      %p523 = scmp.lt.s32.totalorder %s19, 1
      %s524 = scalar_select %p523, %s19, 1
      %s525 = smul.addr %s524, 2
      %s526 = smul.addr %s525, 8
      %s527 = scalar_lea.vmem %s6, %s526
      %p528 = scmp.lt.s32.totalorder %s19, 1
      %s529 = scalar_select %p528, %s19, 1
      %s530 = smul.addr %s529, 2
      %s531 = scalar_lea.vmem %s7, %s530
      // Predicated region
      $region45: #{resblock_forward.4} parent=43 // pred_check
        %p532 = pneg %p173
      $region46: #{resblock_forward.4} parent=43 // pred_check_branch
        %534 = sbr.rel (%p532) target = $region48
      $region47: #{resblock_forward.4} parent=43 // pred_region
        _
      $region48: #{resblock_forward.4} parent=43 // pred_fallthru
        _
      // Predicated region
      $region49: #{resblock_forward.4} parent=43 // pred_check
        %p535 = pneg %p199
      $region50: #{resblock_forward.4} parent=43 // pred_check_branch
        %537 = sbr.rel (%p535) target = $region52
      $region51: #{resblock_forward.4} parent=43 // pred_region
        _
      $region52: #{resblock_forward.4} parent=43 // pred_fallthru
        _
    $region44: #{resblock_forward.4} parent=5 // pred_fallthru
      _
    %p538 = scmp.le.s32.totalorder 2, %s14
    // Predicated region
    $region53: #{resblock_forward.4} parent=5 // pred_check
      %p539 = pneg %p538
    $region54: #{resblock_forward.4} parent=5 // pred_check_branch
      %541 = sbr.rel (%p539) target = $region56
    $region55: #{resblock_forward.4} parent=5 // pred_region
      %s542 = ssub.s32 %s14, 2
      // Predicated region
      $region57: #{resblock_forward.4} parent=55 // pred_check
        %p543 = pneg %p179
      $region58: #{resblock_forward.4} parent=55 // pred_check_branch
        %545 = sbr.rel (%p543) target = $region60
      $region59: #{resblock_forward.4} parent=55 // pred_region
        %p546 = scmp.lt.s32.totalorder %s20, 1
        %s547 = scalar_select %p546, %s20, 1
        %s548 = smul.addr %s547, 2
        %s549 = smul.addr %s548, 8
        %s550 = scalar_lea.vmem %s6, %s549
      $region60: #{resblock_forward.4} parent=55 // pred_fallthru
        _
      // Predicated region
      $region61: #{resblock_forward.4} parent=55 // pred_check
        %p551 = pneg %p205
      $region62: #{resblock_forward.4} parent=55 // pred_check_branch
        %553 = sbr.rel (%p551) target = $region64
      $region63: #{resblock_forward.4} parent=55 // pred_region
        %p554 = scmp.lt.s32.totalorder %s20, 1
        %s555 = scalar_select %p554, %s20, 1
        %s556 = smul.addr %s555, 2
        %s557 = scalar_lea.vmem %s7, %s556
      $region64: #{resblock_forward.4} parent=55 // pred_fallthru
        _
    $region56: #{resblock_forward.4} parent=5 // pred_fallthru
      _
  $region6: #{resblock_forward.4} parent=0 // loop_footer
    %s18 = sadd.s32 1, %s14
  $region7: #{resblock_forward.4} parent=0 // loop_footer_branch
    %13 = sbr.rel target = $region3
  $region8: #{resblock_forward.4} parent=0 // loop_exit
    _

// kernel: resblock_forward.5
$region0: #{resblock_forward.5}
  #allocation0 [shape = 'u32[]', space=smem, size = 0x4, offset = 0x4, fixed_abs, tag = 'smem constant byte address 0x4 - core index']
  #allocation1 [shape = 'u32[72,128]{1,0:T(1,128)}', space=vmem, size = 0x9000, scoped, tag = 'internal scratch']
  %s0 = inlined_call_operand.vmem [shape: f32[2,16,128], index: 0, kind: input, shape index: {}]
  %s1 = inlined_call_operand.vmem [shape: f32[1,128], index: 1, kind: input, shape index: {}]
  %s2 = inlined_call_operand.vmem [shape: f32[1,128], index: 2, kind: input, shape index: {}]
  %s3 = inlined_call_operand.vmem [shape: f32[2,16,128], index: 3, kind: output, shape index: {}]
  %s4 = sld [smem:[#allocation0]]
  $region45: #{resblock_forward.5} parent=0
    _
  %s6 = ssub.s32 1, %s4
  %s7 = scalar_select 0, %s6, %s4
  loop: start=0, step=1, limit=4
  $region2: #{resblock_forward.5} parent=0 // loop_pre_header
    _
  $region3: #{resblock_forward.5} parent=0 // loop_header
    %s9 = sphi 0, %s13
    %p10 = scmp.ge.s32.totalorder %s9, 4
    %s19 = sphi 0, %s21
    %s22 = sphi 0, %s19
    %s23 = sphi 0, %s22
    %s39 = sphi 0, %s23
    %s43 = sphi 0, %s43
    %s45 = sphi 0, %s43
    %s46 = sphi 0, %s45
    %s60 = sphi 0, %s46
    %s64 = sphi 0, %s64
    %s66 = sphi 0, %s64
    %s67 = sphi 0, %s66
    %s81 = sphi 0, %s67
    %s87 = sphi 0, %s89
    %s90 = sphi 0, %s87
    %s91 = sphi 0, %s90
    %s107 = sphi 0, %s91
  $region4: #{resblock_forward.5} parent=0 // loop_header_branch
    %12 = sbr.rel (%p10) target = $region8
  $region5: #{resblock_forward.5} parent=0 // loop_body
    %s14 = ssub.s32 %s9, 1
    %s15 = ssub.s32 %s9, 2
    %s16 = sadd.s32 %s9, 1
    %s17 = ssub.s32 %s9, %s16
    %p18 = scmp.eq.s32.totalorder %s17, 0
    %s20 = sadd.s32 %s19, 1
    %s21 = scalar_select %p18, %s19, %s20
    %p24 = pneg %p18
    %p25 = scmp.eq.s32.totalorder %s9, 1
    %p26 = por %p24, %p25
    %p27 = scmp.ne.s32.totalorder %s19, %s22
    %p28 = scmp.eq.s32.totalorder %s9, 0
    %p29 = por %p27, %p28
    %p30 = scmp.ne.s32.totalorder %s19, %s22
    %p31 = scmp.eq.s32.totalorder %s14, 1
    %p32 = por %p30, %p31
    %p33 = scmp.ne.s32.totalorder %s22, %s23
    %p34 = scmp.eq.s32.totalorder %s14, 0
    %p35 = por %p33, %p34
    %p36 = scmp.ne.s32.totalorder %s22, %s23
    %p37 = scmp.eq.s32.totalorder %s15, 1
    %p38 = por %p36, %p37
    %p40 = scmp.ne.s32.totalorder %s23, %s39
    %p41 = scmp.eq.s32.totalorder %s15, 0
    %p42 = por %p40, %p41
    %s44 = sadd.s32 %s43, 1
    %p47 = scmp.eq.s32.totalorder %s9, 1
    %p48 = scmp.ne.s32.totalorder %s43, %s45
    %p49 = scmp.eq.s32.totalorder %s9, 0
    %p50 = por %p48, %p49
    %p51 = scmp.ne.s32.totalorder %s43, %s45
    %p52 = scmp.eq.s32.totalorder %s14, 1
    %p53 = por %p51, %p52
    %p54 = scmp.ne.s32.totalorder %s45, %s46
    %p55 = scmp.eq.s32.totalorder %s14, 0
    %p56 = por %p54, %p55
    %p57 = scmp.ne.s32.totalorder %s45, %s46
    %p58 = scmp.eq.s32.totalorder %s15, 1
    %p59 = por %p57, %p58
    %p61 = scmp.ne.s32.totalorder %s46, %s60
    %p62 = scmp.eq.s32.totalorder %s15, 0
    %p63 = por %p61, %p62
    %s65 = sadd.s32 %s64, 1
    %p68 = scmp.eq.s32.totalorder %s9, 1
    %p69 = scmp.ne.s32.totalorder %s64, %s66
    %p70 = scmp.eq.s32.totalorder %s9, 0
    %p71 = por %p69, %p70
    %p72 = scmp.ne.s32.totalorder %s64, %s66
    %p73 = scmp.eq.s32.totalorder %s14, 1
    %p74 = por %p72, %p73
    %p75 = scmp.ne.s32.totalorder %s66, %s67
    %p76 = scmp.eq.s32.totalorder %s14, 0
    %p77 = por %p75, %p76
    %p78 = scmp.ne.s32.totalorder %s66, %s67
    %p79 = scmp.eq.s32.totalorder %s15, 1
    %p80 = por %p78, %p79
    %p82 = scmp.ne.s32.totalorder %s67, %s81
    %p83 = scmp.eq.s32.totalorder %s15, 0
    %p84 = por %p82, %p83
    %s85 = ssub.s32 %s9, %s16
    %p86 = scmp.eq.s32.totalorder %s85, 0
    %s88 = sadd.s32 %s87, 1
    %s89 = scalar_select %p86, %s87, %s88
    %p92 = pneg %p86
    %p93 = scmp.eq.s32.totalorder %s9, 1
    %p94 = por %p92, %p93
    %p95 = scmp.ne.s32.totalorder %s87, %s90
    %p96 = scmp.eq.s32.totalorder %s9, 0
    %p97 = por %p95, %p96
    %p98 = scmp.ne.s32.totalorder %s87, %s90
    %p99 = scmp.eq.s32.totalorder %s14, 1
    %p100 = por %p98, %p99
    %p101 = scmp.ne.s32.totalorder %s90, %s91
    %p102 = scmp.eq.s32.totalorder %s14, 0
    %p103 = por %p101, %p102
    %p104 = scmp.ne.s32.totalorder %s90, %s91
    %p105 = scmp.eq.s32.totalorder %s15, 1
    %p106 = por %p104, %p105
    %p108 = scmp.ne.s32.totalorder %s91, %s107
    %p109 = scmp.eq.s32.totalorder %s15, 0
    %p110 = por %p108, %p109
    %p111 = scmp.le.s32.totalorder 1, %s9
    %p112 = scmp.lt.s32.totalorder %s9, 3
    %p113 = pnand %p111, %p112
    %p114 = pneg %p113
    // Predicated region
    $region9: #{resblock_forward.5} parent=5 // pred_check
      _
    $region10: #{resblock_forward.5} parent=5 // pred_check_branch
      %116 = sbr.rel (%p113) target = $region12
    $region11: #{resblock_forward.5} parent=5 // pred_region
      %s117 = ssub.s32 %s9, 1
      // Predicated region
      $region13: #{resblock_forward.5} parent=11 // pred_check
        %p118 = pneg %p56
      $region14: #{resblock_forward.5} parent=11 // pred_check_branch
        %120 = sbr.rel (%p118) target = $region16
      $region15: #{resblock_forward.5} parent=11 // pred_region
        _
      $region16: #{resblock_forward.5} parent=11 // pred_fallthru
        _
      // Predicated region
      $region17: #{resblock_forward.5} parent=11 // pred_check
        %p121 = pneg %p77
      $region18: #{resblock_forward.5} parent=11 // pred_check_branch
        %123 = sbr.rel (%p121) target = $region20
      $region19: #{resblock_forward.5} parent=11 // pred_region
        _
      $region20: #{resblock_forward.5} parent=11 // pred_fallthru
        _
    $region12: #{resblock_forward.5} parent=5 // pred_fallthru
      _
    %p124 = scmp.lt.s32.totalorder %s9, 2
    // Predicated region
    $region21: #{resblock_forward.5} parent=5 // pred_check
      %p125 = pneg %p124
    $region22: #{resblock_forward.5} parent=5 // pred_check_branch
      %127 = sbr.rel (%p125) target = $region24
    $region23: #{resblock_forward.5} parent=5 // pred_region
      // Predicated region
      $region25: #{resblock_forward.5} parent=23 // pred_check
        %p128 = pneg %p29
      $region26: #{resblock_forward.5} parent=23 // pred_check_branch
        %130 = sbr.rel (%p128) target = $region28
      $region27: #{resblock_forward.5} parent=23 // pred_region
        %p131 = scmp.lt.s32.totalorder %s9, 1
        %s132 = scalar_select %p131, %s9, 1
        %s133 = smul.addr %s132, 2
        %s134 = smul.addr %s133, 8
        %s135 = scalar_lea.vmem %s0, %s134
      $region28: #{resblock_forward.5} parent=23 // pred_fallthru
        _
    $region24: #{resblock_forward.5} parent=5 // pred_fallthru
      _
    %p136 = scmp.le.s32.totalorder 1, %s9
    %p137 = scmp.lt.s32.totalorder %s9, 3
    %p138 = pnand %p136, %p137
    %p139 = pneg %p138
    // Predicated region
    $region29: #{resblock_forward.5} parent=5 // pred_check
      _
    $region30: #{resblock_forward.5} parent=5 // pred_check_branch
      %141 = sbr.rel (%p138) target = $region32
    $region31: #{resblock_forward.5} parent=5 // pred_region
      %s142 = ssub.s32 %s9, 1
      %p143 = scmp.lt.s32.totalorder %s14, 1
      %s144 = scalar_select %p143, %s14, 1
      %s145 = smul.addr %s144, 2
      %s146 = smul.addr %s145, 8
      %s147 = scalar_lea.vmem %s0, %s146
      %p148 = pneg %p35
      %p149 = pneg %p32
      %p150 = pneg %p56
      %p151 = pneg %p53
      %p152 = pneg %p77
      %p153 = pneg %p74
      %p154 = pneg %p103
      %p155 = pneg %p100
      %p156 = scmp.lt.s32.totalorder %s14, 1
      %s157 = scalar_select %p156, %s14, 1
      %s158 = smul.addr %s157, 2
      %s159 = smul.addr %s158, 8
      %s160 = scalar_lea.vmem %s3, %s159
      %p161 = scmp.lt.s32.totalorder %s14, 1
      %s162 = scalar_select %p161, %s14, 1
      %s163 = smul.addr %s162, 2
      %s164 = smul.addr %s163, 8
      %s165 = scalar_lea.vmem %s0, %s164
      %p166 = scmp.lt.s32.totalorder %s14, 1
      %s167 = scalar_select %p166, %s14, 1
      %s168 = smul.addr %s167, 2
      %s169 = smul.addr %s168, 8
      %s170 = scalar_lea.vmem %s3, %s169
      %v171 = vld [vmem:[%s165] sm:$0xff]
      %v172 = vld [vmem:[%s165 + $0x8] sm:$0xff]
      %v173 = vld [vmem:[%s1] sm:$0x1]
      %v175 = vperm.slane %v173, 0
      %v177 = vmul.f32 %v171, %v175
      %v178 = vmul.f32 %v172, %v175
      %v179 = vld [vmem:[%s2] sm:$0x1]
      %v181 = vperm.slane %v179, 0
      %v183 = vadd.f32 %v177, %v181
      %v184 = vadd.f32 %v178, %v181
      %v185 = vmax.f32 %v183, 0.0
      %v186 = vmax.f32 %v184, 0.0
      %187 = vst [vmem:[%s170] sm:$0xff] %v185
      %188 = vst [vmem:[%s170 + $0x8] sm:$0xff] %v186
      %p189 = scmp.lt.s32.totalorder %s14, 1
      %s190 = scalar_select %p189, %s14, 1
      %s191 = smul.addr %s190, 2
      %s192 = smul.addr %s191, 8
      %s193 = scalar_lea.vmem %s3, %s192
      // Predicated region
      $region33: #{resblock_forward.5} parent=31 // pred_check
        %p194 = pneg %p100
      $region34: #{resblock_forward.5} parent=31 // pred_check_branch
        %196 = sbr.rel (%p194) target = $region36
      $region35: #{resblock_forward.5} parent=31 // pred_region
        _
      $region36: #{resblock_forward.5} parent=31 // pred_fallthru
        _
    $region32: #{resblock_forward.5} parent=5 // pred_fallthru
      _
    %p197 = scmp.le.s32.totalorder 2, %s9
    // Predicated region
    $region37: #{resblock_forward.5} parent=5 // pred_check
      %p198 = pneg %p197
    $region38: #{resblock_forward.5} parent=5 // pred_check_branch
      %200 = sbr.rel (%p198) target = $region40
    $region39: #{resblock_forward.5} parent=5 // pred_region
      %s201 = ssub.s32 %s9, 2
      // Predicated region
      $region41: #{resblock_forward.5} parent=39 // pred_check
        %p202 = pneg %p106
      $region42: #{resblock_forward.5} parent=39 // pred_check_branch
        %204 = sbr.rel (%p202) target = $region44
      $region43: #{resblock_forward.5} parent=39 // pred_region
        %p205 = scmp.lt.s32.totalorder %s15, 1
        %s206 = scalar_select %p205, %s15, 1
        %s207 = smul.addr %s206, 2
        %s208 = smul.addr %s207, 8
        %s209 = scalar_lea.vmem %s3, %s208
      $region44: #{resblock_forward.5} parent=39 // pred_fallthru
        _
    $region40: #{resblock_forward.5} parent=5 // pred_fallthru
      _
  $region6: #{resblock_forward.5} parent=0 // loop_footer
    %s13 = sadd.s32 1, %s9
  $region7: #{resblock_forward.5} parent=0 // loop_footer_branch
    %8 = sbr.rel target = $region3
  $region8: #{resblock_forward.5} parent=0 // loop_exit
    _

</llo_original>
